<compile_context>
chip_gen: v7x
topology: tpu7x:2x2x1
jax: 0.10.0
libtpu: 0.0.40
codegen_flags: <defaults>
</compile_context>

<pallas_src>
import math

import jax
import jax.numpy as jnp
from jax.experimental import pallas as pl
from jax.experimental.pallas import tpu as pltpu


def _round_up(x, m):
    return (x + m - 1) // m * m


def _make_lstm_kernel(time_tile, seq_len, needs_mask):
    """Kernel factory: TT timesteps per grid step, optional trailing-step mask."""

    def kernel(gx_ref, whh_ref, out_ref, h_ref, c_ref):
        # gx_ref:  (TT, BT, 4*Hp) bf16  precomputed x @ W_ih^T + b
        # whh_ref: (Hp, 4*Hp)     bf16  recurrent weights (constant block index)
        # out_ref: (TT, BT, Hp)   bf16  per-step hidden outputs (lane-dense)
        # h_ref/c_ref: (BT, Hp)   f32   carries; constant-index resident outputs
        @pl.when(pl.program_id(1) == 0)
        def _():
            h_ref[...] = jnp.zeros_like(h_ref)
            c_ref[...] = jnp.zeros_like(c_ref)

        Hp = h_ref.shape[-1]
        w = whh_ref[...]                           # bf16, stays resident
        t0 = pl.program_id(1) * time_tile

        def step(i, carry):
            h, c = carry                           # h: bf16, c: f32
            # One MXU matmul on the serial path; gate math in f32.
            gates = gx_ref[i].astype(jnp.float32) + jnp.dot(
                h, w, preferred_element_type=jnp.float32)
            i_g = jax.nn.sigmoid(gates[:, 0 * Hp:1 * Hp])   # lane-aligned slices
            f_g = jax.nn.sigmoid(gates[:, 1 * Hp:2 * Hp])
            g_g = jnp.tanh(gates[:, 2 * Hp:3 * Hp])
            o_g = jax.nn.sigmoid(gates[:, 3 * Hp:4 * Hp])
            c_new = f_g * c + i_g * g_g
            h_new = (o_g * jnp.tanh(c_new)).astype(jnp.bfloat16)
            if needs_mask:
                valid = (t0 + i) < seq_len         # freeze state on padded steps
                h_new = jnp.where(valid, h_new, h)
                c_new = jnp.where(valid, c_new, c)
            out_ref[i] = h_new                     # full-tile bf16 store
            return h_new, c_new

        h0 = h_ref[...].astype(jnp.bfloat16)       # bf16<->f32 round-trip is exact
        h_fin, c_fin = jax.lax.fori_loop(0, time_tile, step, (h0, c_ref[...]),
                                         unroll=True)
        h_ref[...] = h_fin.astype(jnp.float32)
        c_ref[...] = c_fin

    return kernel


def lstm_recurrence(gates_x, w_hh_t_bf16, *, seq_len, time_tile, batch_tile):
    """Serial LSTM recurrence given precomputed input-projection gates.

    gates_x:     (Tp, Bp, 4*Hp) bf16 -- x @ W_ih^T + b, padded & gate-blocked.
    w_hh_t_bf16: (Hp, 4*Hp)     bf16 -- recurrent weights, padded & gate-blocked.
    Returns (out_seq (Tp, Bp, Hp) bf16, h_T (Bp, Hp) f32, c_T (Bp, Hp) f32).
    """
    Tp, Bp, G = gates_x.shape
    Hp = G // 4
    kernel = _make_lstm_kernel(time_tile, seq_len, Tp != seq_len)
    out_shapes = (jax.ShapeDtypeStruct((Tp, Bp, Hp), jnp.bfloat16),
                  jax.ShapeDtypeStruct((Bp, Hp), jnp.float32),
                  jax.ShapeDtypeStruct((Bp, Hp), jnp.float32))
    return pl.pallas_call(
        kernel,
        out_shape=out_shapes,
        grid_spec=pltpu.PrefetchScalarGridSpec(
            num_scalar_prefetch=0,
            grid=(Bp // batch_tile, Tp // time_tile),      # (batch, time)
            in_specs=[
                pl.BlockSpec((time_tile, batch_tile, G),
                             lambda b, t: (t, b, 0)),      # gates_x tile
                pl.BlockSpec((Hp, G), lambda b, t: (0, 0)),  # W_hh^T (constant)
            ],
            out_specs=[
                pl.BlockSpec((time_tile, batch_tile, Hp),
                             lambda b, t: (t, b, 0)),      # per-step h (bf16)
                pl.BlockSpec((batch_tile, Hp), lambda b, t: (b, 0)),  # final h
                pl.BlockSpec((batch_tile, Hp), lambda b, t: (b, 0)),  # final c
            ],
        ),
        compiler_params=pltpu.CompilerParams(
            dimension_semantics=("parallel", "arbitrary"),
            vmem_limit_bytes=32 * 1024 * 1024),
    )(gates_x, w_hh_t_bf16)


def init_params(key, vocab_size, emb_size, hidden_size, num_layers):
    """Raw parameters in the PyTorch layout (used by both kernel prep and ref)."""
    keys = jax.random.split(key, 1 + 4 * num_layers)
    bound = 1.0 / math.sqrt(hidden_size)
    params = {"embedding": jax.random.normal(keys[0], (vocab_size, emb_size),
                                             jnp.float32),
              "layers": []}
    for l in range(num_layers):
        in_dim = emb_size if l == 0 else hidden_size
        k_ih, k_hh, k_bih, k_bhh = keys[1 + 4 * l: 1 + 4 * (l + 1)]
        params["layers"].append({
            "w_ih": jax.random.uniform(k_ih, (4 * hidden_size, in_dim),
                                       jnp.float32, -bound, bound),
            "w_hh": jax.random.uniform(k_hh, (4 * hidden_size, hidden_size),
                                       jnp.float32, -bound, bound),
            "b_ih": jax.random.uniform(k_bih, (4 * hidden_size,),
                                       jnp.float32, -bound, bound),
            "b_hh": jax.random.uniform(k_bhh, (4 * hidden_size,),
                                       jnp.float32, -bound, bound),
        })
    return params


def prepare_params(raw, *, lane=128):
    """One-time kernel-ready layout: transpose, gate-blocked H padding, bf16 W."""
    H = raw["layers"][0]["w_hh"].shape[1]
    Hp = _round_up(H, lane)
    layers = []
    for l, lp in enumerate(raw["layers"]):
        in_dim = lp["w_ih"].shape[1]
        in_p = in_dim if l == 0 else Hp          # layers > 0 consume the padded h seq
        # W_ih^T padded per-gate, bf16: (in_p, 4*Hp) (big MXU matmul operand).
        w_ih_t = lp["w_ih"].T.reshape(in_dim, 4, H)
        w_ih_t = jnp.pad(w_ih_t, ((0, in_p - in_dim), (0, 0), (0, Hp - H)))
        w_ih_t = w_ih_t.reshape(in_p, 4 * Hp).astype(jnp.bfloat16)
        # W_hh^T padded per-gate, bf16: (Hp, 4*Hp).
        w_hh_t = lp["w_hh"].T.reshape(H, 4, H)
        w_hh_t = jnp.pad(w_hh_t, ((0, Hp - H), (0, 0), (0, Hp - H)))
        w_hh_t = w_hh_t.reshape(Hp, 4 * Hp).astype(jnp.bfloat16)
        # Fused bias, padded per-gate, f32: (1, 4*Hp).
        b = (lp["b_ih"] + lp["b_hh"]).reshape(4, H)
        b = jnp.pad(b, ((0, 0), (0, Hp - H))).reshape(1, 4 * Hp)
        layers.append({"w_ih_t": w_ih_t, "w_hh_t": w_hh_t, "b": b})
    return {"embedding": raw["embedding"], "layers": layers, "H": H, "Hp": Hp}


def encoder_forward(prep, x, *, sublane=8, max_time_tile=8, batch_tile=8):
    """x: (T, B) int32 token ids -> (hidden, cell), each (num_layers, B, H)."""
    T, B = x.shape
    H, Hp = prep["H"], prep["Hp"]
    Bp = _round_up(B, sublane)
    bt = min(batch_tile, Bp)
    TT = min(max_time_tile, T)
    Tp = _round_up(T, TT)                                          # padded seq len

    emb = jnp.take(prep["embedding"], x, axis=0)                   # (T, B, E) glue
    # dropout: identity (eval mode)
    seq = jnp.pad(emb, ((0, Tp - T), (0, Bp - B), (0, 0)))
    seq = seq.astype(jnp.bfloat16)                                 # (Tp, Bp, E)

    hs, cs = [], []
    for lp in prep["layers"]:
        in_dim = lp["w_ih_t"].shape[0]
        # Hoisted input projection: ONE big bf16 MXU matmul over all timesteps.
        gx = jnp.dot(seq.reshape(Tp * Bp, in_dim), lp["w_ih_t"],
                     preferred_element_type=jnp.float32) + lp["b"]
        gx = gx.astype(jnp.bfloat16).reshape(Tp, Bp, 4 * Hp)
        seq, h, c = lstm_recurrence(gx, lp["w_hh_t"], seq_len=T,
                                    time_tile=TT, batch_tile=bt)
        hs.append(h[:B, :H])
        cs.append(c[:B, :H])
        # inter-layer dropout: identity (eval mode)
    return jnp.stack(hs, axis=0), jnp.stack(cs, axis=0)


def _encoder_ref(raw, x):
    """Pure-JAX f32 reference (PyTorch gate order i, f, g, o)."""
    emb = jnp.take(raw["embedding"], x, axis=0)
    seq = emb
    B = x.shape[1]
    hs, cs = [], []
    for lp in raw["layers"]:
        w_ih_t, w_hh_t = lp["w_ih"].T, lp["w_hh"].T
        b = (lp["b_ih"] + lp["b_hh"])[None, :]
        H = lp["w_hh"].shape[1]

        def step(carry, x_t, w_ih_t=w_ih_t, w_hh_t=w_hh_t, b=b, H=H):
            h, c = carry
            g = x_t @ w_ih_t + h @ w_hh_t + b
            i = jax.nn.sigmoid(g[:, :H])
            f = jax.nn.sigmoid(g[:, H:2 * H])
            gg = jnp.tanh(g[:, 2 * H:3 * H])
            o = jax.nn.sigmoid(g[:, 3 * H:])
            c = f * c + i * gg
            h = o * jnp.tanh(c)
            return (h, c), h

        init = (jnp.zeros((B, H), jnp.float32), jnp.zeros((B, H), jnp.float32))
        (h, c), ys = jax.lax.scan(step, init, seq)
        seq = ys
        hs.append(h)
        cs.append(c)
    return jnp.stack(hs, axis=0), jnp.stack(cs, axis=0)


def _run_case(raw, prep, key, T, B, vocab, H, L, tol):
    x = jax.random.randint(key, (T, B), 0, vocab, dtype=jnp.int32)
    hidden, cell = encoder_forward(prep, x)
    hidden, cell = jax.block_until_ready((hidden, cell))
    h_ref, c_ref = _encoder_ref(raw, x)
    assert hidden.shape == (L, B, H) and cell.shape == (L, B, H)
    # bf16 weights / gate streams -> tolerance loosened vs. the pure-f32 ref.
    assert jnp.allclose(hidden, h_ref, atol=tol, rtol=tol), \
        float(jnp.max(jnp.abs(hidden - h_ref)))
    assert jnp.allclose(cell, c_ref, atol=tol, rtol=tol), \
        float(jnp.max(jnp.abs(cell - c_ref)))


if __name__ == "__main__":
    # Small shapes consistent with the module's forward.
    VOCAB = 50                   # input_size
    E, H, L = 32, 32, 2          # embedding_size, hidden_size, num_layers

    key = jax.random.PRNGKey(0)
    k_params, k_x1, k_x2 = jax.random.split(key, 3)
    raw = init_params(k_params, VOCAB, E, H, L)
    prep = prepare_params(raw)

    # Case 1: T divisible by the time tile (fast path, no masking).
    _run_case(raw, prep, k_x1, T=8, B=2, vocab=VOCAB, H=H, L=L, tol=3e-2)
    # Case 2: awkward T -> exercises T-padding + in-kernel trailing-step mask.
    _run_case(raw, prep, k_x2, T=13, B=3, vocab=VOCAB, H=H, L=L, tol=3e-2)

    print("KERNEL_OK")
</pallas_src>

<mosaic_0001>
module attributes {stable_mosaic.version = 11 : i64} {
  func.func @kernel(%arg0: i32, %arg1: i32, %arg2: memref<8x8x512xbf16, #tpu.memory_space<vmem>>, %arg3: memref<128x512xbf16, #tpu.memory_space<vmem>>, %arg4: memref<8x8x128xbf16, #tpu.memory_space<vmem>>, %arg5: memref<8x128xf32, #tpu.memory_space<vmem>>, %arg6: memref<8x128xf32, #tpu.memory_space<vmem>>) attributes {dimension_semantics = [#tpu.dimension_semantics<parallel>, #tpu.dimension_semantics<arbitrary>], iteration_bounds = array<i64: 1, 1>, scalar_prefetch = 0 : i64, scratch_operands = 0 : i64, tpu.core_type = #tpu.core_type<tc>, window_params = [{transform_indices = @transform_0, window_bounds = array<i64: 8, 8, 512>}, {pipeline_mode = #tpu.pipeline_mode<synchronous>, transform_indices = @transform_1, window_bounds = array<i64: 128, 512>}, {transform_indices = @transform_2, window_bounds = array<i64: 8, 8, 128>}, {transform_indices = @transform_3, window_bounds = array<i64: 8, 128>}, {transform_indices = @transform_4, window_bounds = array<i64: 8, 128>}]} {
    %c0_i32 = arith.constant 0 : i32
    %0 = arith.cmpi eq, %arg1, %c0_i32 : i32
    %1 = arith.extui %0 : i1 to i32
    %c0_i32_0 = arith.constant 0 : i32
    %2 = arith.cmpi ne, %1, %c0_i32_0 : i32
    scf.if %2 {
      %cst_74 = arith.constant 0.000000e+00 : f32
      %298 = vector.broadcast %cst_74 : f32 to vector<8x128xf32>
      %c0_75 = arith.constant 0 : index
      %c0_76 = arith.constant 0 : index
      %299 = vector.load %arg5[%c0_75, %c0_76] : memref<8x128xf32, #tpu.memory_space<vmem>>, vector<8x128xf32>
      tpu.vector_store %arg5[%c0_75, %c0_76], %298 {strides = array<i32>} : memref<8x128xf32, #tpu.memory_space<vmem>>, vector<8x128xf32>,
      %cst_77 = arith.constant 0.000000e+00 : f32
      %300 = vector.broadcast %cst_77 : f32 to vector<8x128xf32>
      %c0_78 = arith.constant 0 : index
      %c0_79 = arith.constant 0 : index
      %301 = vector.load %arg6[%c0_78, %c0_79] : memref<8x128xf32, #tpu.memory_space<vmem>>, vector<8x128xf32>
      tpu.vector_store %arg6[%c0_78, %c0_79], %300 {strides = array<i32>} : memref<8x128xf32, #tpu.memory_space<vmem>>, vector<8x128xf32>,
    } else {
    }
    %c0 = arith.constant 0 : index
    %c0_1 = arith.constant 0 : index
    %3 = vector.load %arg3[%c0, %c0_1] : memref<128x512xbf16, #tpu.memory_space<vmem>>, vector<128x512xbf16>
    %c0_2 = arith.constant 0 : index
    %c0_3 = arith.constant 0 : index
    %4 = vector.load %arg5[%c0_2, %c0_3] : memref<8x128xf32, #tpu.memory_space<vmem>>, vector<8x128xf32>
    %5 = arith.truncf %4 : vector<8x128xf32> to vector<8x128xbf16>
    %c0_4 = arith.constant 0 : index
    %c0_5 = arith.constant 0 : index
    %6 = vector.load %arg6[%c0_4, %c0_5] : memref<8x128xf32, #tpu.memory_space<vmem>>, vector<8x128xf32>
    %c0_i32_6 = arith.constant 0 : i32
    %7 = arith.index_cast %c0_i32_6 : i32 to index
    %c0_7 = arith.constant 0 : index
    %c0_8 = arith.constant 0 : index
    %8 = vector.load %arg2[%7, %c0_7, %c0_8] : memref<8x8x512xbf16, #tpu.memory_space<vmem>>, vector<1x8x512xbf16>
    %9 = vector.shape_cast %8 : vector<1x8x512xbf16> to vector<8x512xbf16>
    %10 = arith.extf %9 : vector<8x512xbf16> to vector<8x512xf32>
    %cst = arith.constant dense<0.000000e+00> : vector<8x512xf32>
    %11 = tpu.matmul %5, %3, %cst {dimension_numbers = #tpu.dot_dimension_numbers<[1], [0], [0], [1], [0, 0, 1, 1], [], []>} : vector<8x128xbf16>, vector<128x512xbf16>, vector<8x512xf32> -> vector<8x512xf32>
    %12 = arith.addf %10, %11 : vector<8x512xf32>
    %13 = vector.extract_strided_slice %12 {offsets = [0, 0], sizes = [8, 128], strides = [1, 1]} : vector<8x512xf32> to vector<8x128xf32>
    %14 = arith.negf %13 : vector<8x128xf32>
    %15 = math.exp %14 : vector<8x128xf32>
    %cst_9 = arith.constant 1.000000e+00 : f32
    %16 = vector.broadcast %cst_9 : f32 to vector<8x128xf32>
    %17 = arith.addf %16, %15 : vector<8x128xf32>
    %18 = arith.divf %16, %17 : vector<8x128xf32>
    %19 = vector.extract_strided_slice %12 {offsets = [0, 128], sizes = [8, 128], strides = [1, 1]} : vector<8x512xf32> to vector<8x128xf32>
    %20 = arith.negf %19 : vector<8x128xf32>
    %21 = math.exp %20 : vector<8x128xf32>
    %cst_10 = arith.constant 1.000000e+00 : f32
    %22 = vector.broadcast %cst_10 : f32 to vector<8x128xf32>
    %23 = arith.addf %22, %21 : vector<8x128xf32>
    %24 = arith.divf %22, %23 : vector<8x128xf32>
    %25 = vector.extract_strided_slice %12 {offsets = [0, 256], sizes = [8, 128], strides = [1, 1]} : vector<8x512xf32> to vector<8x128xf32>
    %26 = math.tanh %25 : vector<8x128xf32>
    %27 = vector.extract_strided_slice %12 {offsets = [0, 384], sizes = [8, 128], strides = [1, 1]} : vector<8x512xf32> to vector<8x128xf32>
    %28 = arith.negf %27 : vector<8x128xf32>
    %29 = math.exp %28 : vector<8x128xf32>
    %cst_11 = arith.constant 1.000000e+00 : f32
    %30 = vector.broadcast %cst_11 : f32 to vector<8x128xf32>
    %31 = arith.addf %30, %29 : vector<8x128xf32>
    %32 = arith.divf %30, %31 : vector<8x128xf32>
    %33 = arith.mulf %24, %6 : vector<8x128xf32>
    %34 = arith.mulf %18, %26 : vector<8x128xf32>
    %35 = arith.addf %33, %34 : vector<8x128xf32>
    %36 = math.tanh %35 : vector<8x128xf32>
    %37 = arith.mulf %32, %36 : vector<8x128xf32>
    %38 = arith.truncf %37 : vector<8x128xf32> to vector<8x128xbf16>
    %39 = arith.index_cast %c0_i32_6 : i32 to index
    %c0_12 = arith.constant 0 : index
    %c0_13 = arith.constant 0 : index
    %40 = vector.load %arg4[%39, %c0_12, %c0_13] : memref<8x8x128xbf16, #tpu.memory_space<vmem>>, vector<1x8x128xbf16>
    %41 = vector.shape_cast %40 : vector<1x8x128xbf16> to vector<8x128xbf16>
    %42 = vector.shape_cast %38 : vector<8x128xbf16> to vector<1x8x128xbf16>
    tpu.vector_store %arg4[%39, %c0_12, %c0_13], %42 {strides = array<i32>} : memref<8x8x128xbf16, #tpu.memory_space<vmem>>, vector<1x8x128xbf16>,
    %c1_i32 = arith.constant 1 : i32
    %43 = arith.index_cast %c1_i32 : i32 to index
    %c0_14 = arith.constant 0 : index
    %c0_15 = arith.constant 0 : index
    %44 = vector.load %arg2[%43, %c0_14, %c0_15] : memref<8x8x512xbf16, #tpu.memory_space<vmem>>, vector<1x8x512xbf16>
    %45 = vector.shape_cast %44 : vector<1x8x512xbf16> to vector<8x512xbf16>
    %46 = arith.extf %45 : vector<8x512xbf16> to vector<8x512xf32>
    %cst_16 = arith.constant dense<0.000000e+00> : vector<8x512xf32>
    %47 = tpu.matmul %38, %3, %cst_16 {dimension_numbers = #tpu.dot_dimension_numbers<[1], [0], [0], [1], [0, 0, 1, 1], [], []>} : vector<8x128xbf16>, vector<128x512xbf16>, vector<8x512xf32> -> vector<8x512xf32>
    %48 = arith.addf %46, %47 : vector<8x512xf32>
    %49 = vector.extract_strided_slice %48 {offsets = [0, 0], sizes = [8, 128], strides = [1, 1]} : vector<8x512xf32> to vector<8x128xf32>
    %50 = arith.negf %49 : vector<8x128xf32>
    %51 = math.exp %50 : vector<8x128xf32>
    %cst_17 = arith.constant 1.000000e+00 : f32
    %52 = vector.broadcast %cst_17 : f32 to vector<8x128xf32>
    %53 = arith.addf %52, %51 : vector<8x128xf32>
    %54 = arith.divf %52, %53 : vector<8x128xf32>
    %55 = vector.extract_strided_slice %48 {offsets = [0, 128], sizes = [8, 128], strides = [1, 1]} : vector<8x512xf32> to vector<8x128xf32>
    %56 = arith.negf %55 : vector<8x128xf32>
    %57 = math.exp %56 : vector<8x128xf32>
    %cst_18 = arith.constant 1.000000e+00 : f32
    %58 = vector.broadcast %cst_18 : f32 to vector<8x128xf32>
    %59 = arith.addf %58, %57 : vector<8x128xf32>
    %60 = arith.divf %58, %59 : vector<8x128xf32>
    %61 = vector.extract_strided_slice %48 {offsets = [0, 256], sizes = [8, 128], strides = [1, 1]} : vector<8x512xf32> to vector<8x128xf32>
    %62 = math.tanh %61 : vector<8x128xf32>
    %63 = vector.extract_strided_slice %48 {offsets = [0, 384], sizes = [8, 128], strides = [1, 1]} : vector<8x512xf32> to vector<8x128xf32>
    %64 = arith.negf %63 : vector<8x128xf32>
    %65 = math.exp %64 : vector<8x128xf32>
    %cst_19 = arith.constant 1.000000e+00 : f32
    %66 = vector.broadcast %cst_19 : f32 to vector<8x128xf32>
    %67 = arith.addf %66, %65 : vector<8x128xf32>
    %68 = arith.divf %66, %67 : vector<8x128xf32>
    %69 = arith.mulf %60, %35 : vector<8x128xf32>
    %70 = arith.mulf %54, %62 : vector<8x128xf32>
    %71 = arith.addf %69, %70 : vector<8x128xf32>
    %72 = math.tanh %71 : vector<8x128xf32>
    %73 = arith.mulf %68, %72 : vector<8x128xf32>
    %74 = arith.truncf %73 : vector<8x128xf32> to vector<8x128xbf16>
    %75 = arith.index_cast %c1_i32 : i32 to index
    %c0_20 = arith.constant 0 : index
    %c0_21 = arith.constant 0 : index
    %76 = vector.load %arg4[%75, %c0_20, %c0_21] : memref<8x8x128xbf16, #tpu.memory_space<vmem>>, vector<1x8x128xbf16>
    %77 = vector.shape_cast %76 : vector<1x8x128xbf16> to vector<8x128xbf16>
    %78 = vector.shape_cast %74 : vector<8x128xbf16> to vector<1x8x128xbf16>
    tpu.vector_store %arg4[%75, %c0_20, %c0_21], %78 {strides = array<i32>} : memref<8x8x128xbf16, #tpu.memory_space<vmem>>, vector<1x8x128xbf16>,
    %c2_i32 = arith.constant 2 : i32
    %79 = arith.index_cast %c2_i32 : i32 to index
    %c0_22 = arith.constant 0 : index
    %c0_23 = arith.constant 0 : index
    %80 = vector.load %arg2[%79, %c0_22, %c0_23] : memref<8x8x512xbf16, #tpu.memory_space<vmem>>, vector<1x8x512xbf16>
    %81 = vector.shape_cast %80 : vector<1x8x512xbf16> to vector<8x512xbf16>
    %82 = arith.extf %81 : vector<8x512xbf16> to vector<8x512xf32>
    %cst_24 = arith.constant dense<0.000000e+00> : vector<8x512xf32>
    %83 = tpu.matmul %74, %3, %cst_24 {dimension_numbers = #tpu.dot_dimension_numbers<[1], [0], [0], [1], [0, 0, 1, 1], [], []>} : vector<8x128xbf16>, vector<128x512xbf16>, vector<8x512xf32> -> vector<8x512xf32>
    %84 = arith.addf %82, %83 : vector<8x512xf32>
    %85 = vector.extract_strided_slice %84 {offsets = [0, 0], sizes = [8, 128], strides = [1, 1]} : vector<8x512xf32> to vector<8x128xf32>
    %86 = arith.negf %85 : vector<8x128xf32>
    %87 = math.exp %86 : vector<8x128xf32>
    %cst_25 = arith.constant 1.000000e+00 : f32
    %88 = vector.broadcast %cst_25 : f32 to vector<8x128xf32>
    %89 = arith.addf %88, %87 : vector<8x128xf32>
    %90 = arith.divf %88, %89 : vector<8x128xf32>
    %91 = vector.extract_strided_slice %84 {offsets = [0, 128], sizes = [8, 128], strides = [1, 1]} : vector<8x512xf32> to vector<8x128xf32>
    %92 = arith.negf %91 : vector<8x128xf32>
    %93 = math.exp %92 : vector<8x128xf32>
    %cst_26 = arith.constant 1.000000e+00 : f32
    %94 = vector.broadcast %cst_26 : f32 to vector<8x128xf32>
    %95 = arith.addf %94, %93 : vector<8x128xf32>
    %96 = arith.divf %94, %95 : vector<8x128xf32>
    %97 = vector.extract_strided_slice %84 {offsets = [0, 256], sizes = [8, 128], strides = [1, 1]} : vector<8x512xf32> to vector<8x128xf32>
    %98 = math.tanh %97 : vector<8x128xf32>
    %99 = vector.extract_strided_slice %84 {offsets = [0, 384], sizes = [8, 128], strides = [1, 1]} : vector<8x512xf32> to vector<8x128xf32>
    %100 = arith.negf %99 : vector<8x128xf32>
    %101 = math.exp %100 : vector<8x128xf32>
    %cst_27 = arith.constant 1.000000e+00 : f32
    %102 = vector.broadcast %cst_27 : f32 to vector<8x128xf32>
    %103 = arith.addf %102, %101 : vector<8x128xf32>
    %104 = arith.divf %102, %103 : vector<8x128xf32>
    %105 = arith.mulf %96, %71 : vector<8x128xf32>
    %106 = arith.mulf %90, %98 : vector<8x128xf32>
    %107 = arith.addf %105, %106 : vector<8x128xf32>
    %108 = math.tanh %107 : vector<8x128xf32>
    %109 = arith.mulf %104, %108 : vector<8x128xf32>
    %110 = arith.truncf %109 : vector<8x128xf32> to vector<8x128xbf16>
    %111 = arith.index_cast %c2_i32 : i32 to index
    %c0_28 = arith.constant 0 : index
    %c0_29 = arith.constant 0 : index
    %112 = vector.load %arg4[%111, %c0_28, %c0_29] : memref<8x8x128xbf16, #tpu.memory_space<vmem>>, vector<1x8x128xbf16>
    %113 = vector.shape_cast %112 : vector<1x8x128xbf16> to vector<8x128xbf16>
    %114 = vector.shape_cast %110 : vector<8x128xbf16> to vector<1x8x128xbf16>
    tpu.vector_store %arg4[%111, %c0_28, %c0_29], %114 {strides = array<i32>} : memref<8x8x128xbf16, #tpu.memory_space<vmem>>, vector<1x8x128xbf16>,
    %c3_i32 = arith.constant 3 : i32
    %115 = arith.index_cast %c3_i32 : i32 to index
    %c0_30 = arith.constant 0 : index
    %c0_31 = arith.constant 0 : index
    %116 = vector.load %arg2[%115, %c0_30, %c0_31] : memref<8x8x512xbf16, #tpu.memory_space<vmem>>, vector<1x8x512xbf16>
    %117 = vector.shape_cast %116 : vector<1x8x512xbf16> to vector<8x512xbf16>
    %118 = arith.extf %117 : vector<8x512xbf16> to vector<8x512xf32>
    %cst_32 = arith.constant dense<0.000000e+00> : vector<8x512xf32>
    %119 = tpu.matmul %110, %3, %cst_32 {dimension_numbers = #tpu.dot_dimension_numbers<[1], [0], [0], [1], [0, 0, 1, 1], [], []>} : vector<8x128xbf16>, vector<128x512xbf16>, vector<8x512xf32> -> vector<8x512xf32>
    %120 = arith.addf %118, %119 : vector<8x512xf32>
    %121 = vector.extract_strided_slice %120 {offsets = [0, 0], sizes = [8, 128], strides = [1, 1]} : vector<8x512xf32> to vector<8x128xf32>
    %122 = arith.negf %121 : vector<8x128xf32>
    %123 = math.exp %122 : vector<8x128xf32>
    %cst_33 = arith.constant 1.000000e+00 : f32
    %124 = vector.broadcast %cst_33 : f32 to vector<8x128xf32>
    %125 = arith.addf %124, %123 : vector<8x128xf32>
    %126 = arith.divf %124, %125 : vector<8x128xf32>
    %127 = vector.extract_strided_slice %120 {offsets = [0, 128], sizes = [8, 128], strides = [1, 1]} : vector<8x512xf32> to vector<8x128xf32>
    %128 = arith.negf %127 : vector<8x128xf32>
    %129 = math.exp %128 : vector<8x128xf32>
    %cst_34 = arith.constant 1.000000e+00 : f32
    %130 = vector.broadcast %cst_34 : f32 to vector<8x128xf32>
    %131 = arith.addf %130, %129 : vector<8x128xf32>
    %132 = arith.divf %130, %131 : vector<8x128xf32>
    %133 = vector.extract_strided_slice %120 {offsets = [0, 256], sizes = [8, 128], strides = [1, 1]} : vector<8x512xf32> to vector<8x128xf32>
    %134 = math.tanh %133 : vector<8x128xf32>
    %135 = vector.extract_strided_slice %120 {offsets = [0, 384], sizes = [8, 128], strides = [1, 1]} : vector<8x512xf32> to vector<8x128xf32>
    %136 = arith.negf %135 : vector<8x128xf32>
    %137 = math.exp %136 : vector<8x128xf32>
    %cst_35 = arith.constant 1.000000e+00 : f32
    %138 = vector.broadcast %cst_35 : f32 to vector<8x128xf32>
    %139 = arith.addf %138, %137 : vector<8x128xf32>
    %140 = arith.divf %138, %139 : vector<8x128xf32>
    %141 = arith.mulf %132, %107 : vector<8x128xf32>
    %142 = arith.mulf %126, %134 : vector<8x128xf32>
    %143 = arith.addf %141, %142 : vector<8x128xf32>
    %144 = math.tanh %143 : vector<8x128xf32>
    %145 = arith.mulf %140, %144 : vector<8x128xf32>
    %146 = arith.truncf %145 : vector<8x128xf32> to vector<8x128xbf16>
    %147 = arith.index_cast %c3_i32 : i32 to index
    %c0_36 = arith.constant 0 : index
    %c0_37 = arith.constant 0 : index
    %148 = vector.load %arg4[%147, %c0_36, %c0_37] : memref<8x8x128xbf16, #tpu.memory_space<vmem>>, vector<1x8x128xbf16>
    %149 = vector.shape_cast %148 : vector<1x8x128xbf16> to vector<8x128xbf16>
    %150 = vector.shape_cast %146 : vector<8x128xbf16> to vector<1x8x128xbf16>
    tpu.vector_store %arg4[%147, %c0_36, %c0_37], %150 {strides = array<i32>} : memref<8x8x128xbf16, #tpu.memory_space<vmem>>, vector<1x8x128xbf16>,
    %c4_i32 = arith.constant 4 : i32
    %151 = arith.index_cast %c4_i32 : i32 to index
    %c0_38 = arith.constant 0 : index
    %c0_39 = arith.constant 0 : index
    %152 = vector.load %arg2[%151, %c0_38, %c0_39] : memref<8x8x512xbf16, #tpu.memory_space<vmem>>, vector<1x8x512xbf16>
    %153 = vector.shape_cast %152 : vector<1x8x512xbf16> to vector<8x512xbf16>
    %154 = arith.extf %153 : vector<8x512xbf16> to vector<8x512xf32>
    %cst_40 = arith.constant dense<0.000000e+00> : vector<8x512xf32>
    %155 = tpu.matmul %146, %3, %cst_40 {dimension_numbers = #tpu.dot_dimension_numbers<[1], [0], [0], [1], [0, 0, 1, 1], [], []>} : vector<8x128xbf16>, vector<128x512xbf16>, vector<8x512xf32> -> vector<8x512xf32>
    %156 = arith.addf %154, %155 : vector<8x512xf32>
    %157 = vector.extract_strided_slice %156 {offsets = [0, 0], sizes = [8, 128], strides = [1, 1]} : vector<8x512xf32> to vector<8x128xf32>
    %158 = arith.negf %157 : vector<8x128xf32>
    %159 = math.exp %158 : vector<8x128xf32>
    %cst_41 = arith.constant 1.000000e+00 : f32
    %160 = vector.broadcast %cst_41 : f32 to vector<8x128xf32>
    %161 = arith.addf %160, %159 : vector<8x128xf32>
    %162 = arith.divf %160, %161 : vector<8x128xf32>
    %163 = vector.extract_strided_slice %156 {offsets = [0, 128], sizes = [8, 128], strides = [1, 1]} : vector<8x512xf32> to vector<8x128xf32>
    %164 = arith.negf %163 : vector<8x128xf32>
    %165 = math.exp %164 : vector<8x128xf32>
    %cst_42 = arith.constant 1.000000e+00 : f32
    %166 = vector.broadcast %cst_42 : f32 to vector<8x128xf32>
    %167 = arith.addf %166, %165 : vector<8x128xf32>
    %168 = arith.divf %166, %167 : vector<8x128xf32>
    %169 = vector.extract_strided_slice %156 {offsets = [0, 256], sizes = [8, 128], strides = [1, 1]} : vector<8x512xf32> to vector<8x128xf32>
    %170 = math.tanh %169 : vector<8x128xf32>
    %171 = vector.extract_strided_slice %156 {offsets = [0, 384], sizes = [8, 128], strides = [1, 1]} : vector<8x512xf32> to vector<8x128xf32>
    %172 = arith.negf %171 : vector<8x128xf32>
    %173 = math.exp %172 : vector<8x128xf32>
    %cst_43 = arith.constant 1.000000e+00 : f32
    %174 = vector.broadcast %cst_43 : f32 to vector<8x128xf32>
    %175 = arith.addf %174, %173 : vector<8x128xf32>
    %176 = arith.divf %174, %175 : vector<8x128xf32>
    %177 = arith.mulf %168, %143 : vector<8x128xf32>
    %178 = arith.mulf %162, %170 : vector<8x128xf32>
    %179 = arith.addf %177, %178 : vector<8x128xf32>
    %180 = math.tanh %179 : vector<8x128xf32>
    %181 = arith.mulf %176, %180 : vector<8x128xf32>
    %182 = arith.truncf %181 : vector<8x128xf32> to vector<8x128xbf16>
    %183 = arith.index_cast %c4_i32 : i32 to index
    %c0_44 = arith.constant 0 : index
    %c0_45 = arith.constant 0 : index
    %184 = vector.load %arg4[%183, %c0_44, %c0_45] : memref<8x8x128xbf16, #tpu.memory_space<vmem>>, vector<1x8x128xbf16>
    %185 = vector.shape_cast %184 : vector<1x8x128xbf16> to vector<8x128xbf16>
    %186 = vector.shape_cast %182 : vector<8x128xbf16> to vector<1x8x128xbf16>
    tpu.vector_store %arg4[%183, %c0_44, %c0_45], %186 {strides = array<i32>} : memref<8x8x128xbf16, #tpu.memory_space<vmem>>, vector<1x8x128xbf16>,
    %c5_i32 = arith.constant 5 : i32
    %187 = arith.index_cast %c5_i32 : i32 to index
    %c0_46 = arith.constant 0 : index
    %c0_47 = arith.constant 0 : index
    %188 = vector.load %arg2[%187, %c0_46, %c0_47] : memref<8x8x512xbf16, #tpu.memory_space<vmem>>, vector<1x8x512xbf16>
    %189 = vector.shape_cast %188 : vector<1x8x512xbf16> to vector<8x512xbf16>
    %190 = arith.extf %189 : vector<8x512xbf16> to vector<8x512xf32>
    %cst_48 = arith.constant dense<0.000000e+00> : vector<8x512xf32>
    %191 = tpu.matmul %182, %3, %cst_48 {dimension_numbers = #tpu.dot_dimension_numbers<[1], [0], [0], [1], [0, 0, 1, 1], [], []>} : vector<8x128xbf16>, vector<128x512xbf16>, vector<8x512xf32> -> vector<8x512xf32>
    %192 = arith.addf %190, %191 : vector<8x512xf32>
    %193 = vector.extract_strided_slice %192 {offsets = [0, 0], sizes = [8, 128], strides = [1, 1]} : vector<8x512xf32> to vector<8x128xf32>
    %194 = arith.negf %193 : vector<8x128xf32>
    %195 = math.exp %194 : vector<8x128xf32>
    %cst_49 = arith.constant 1.000000e+00 : f32
    %196 = vector.broadcast %cst_49 : f32 to vector<8x128xf32>
    %197 = arith.addf %196, %195 : vector<8x128xf32>
    %198 = arith.divf %196, %197 : vector<8x128xf32>
    %199 = vector.extract_strided_slice %192 {offsets = [0, 128], sizes = [8, 128], strides = [1, 1]} : vector<8x512xf32> to vector<8x128xf32>
    %200 = arith.negf %199 : vector<8x128xf32>
    %201 = math.exp %200 : vector<8x128xf32>
    %cst_50 = arith.constant 1.000000e+00 : f32
    %202 = vector.broadcast %cst_50 : f32 to vector<8x128xf32>
    %203 = arith.addf %202, %201 : vector<8x128xf32>
    %204 = arith.divf %202, %203 : vector<8x128xf32>
    %205 = vector.extract_strided_slice %192 {offsets = [0, 256], sizes = [8, 128], strides = [1, 1]} : vector<8x512xf32> to vector<8x128xf32>
    %206 = math.tanh %205 : vector<8x128xf32>
    %207 = vector.extract_strided_slice %192 {offsets = [0, 384], sizes = [8, 128], strides = [1, 1]} : vector<8x512xf32> to vector<8x128xf32>
    %208 = arith.negf %207 : vector<8x128xf32>
    %209 = math.exp %208 : vector<8x128xf32>
    %cst_51 = arith.constant 1.000000e+00 : f32
    %210 = vector.broadcast %cst_51 : f32 to vector<8x128xf32>
    %211 = arith.addf %210, %209 : vector<8x128xf32>
    %212 = arith.divf %210, %211 : vector<8x128xf32>
    %213 = arith.mulf %204, %179 : vector<8x128xf32>
    %214 = arith.mulf %198, %206 : vector<8x128xf32>
    %215 = arith.addf %213, %214 : vector<8x128xf32>
    %216 = math.tanh %215 : vector<8x128xf32>
    %217 = arith.mulf %212, %216 : vector<8x128xf32>
    %218 = arith.truncf %217 : vector<8x128xf32> to vector<8x128xbf16>
    %219 = arith.index_cast %c5_i32 : i32 to index
    %c0_52 = arith.constant 0 : index
    %c0_53 = arith.constant 0 : index
    %220 = vector.load %arg4[%219, %c0_52, %c0_53] : memref<8x8x128xbf16, #tpu.memory_space<vmem>>, vector<1x8x128xbf16>
    %221 = vector.shape_cast %220 : vector<1x8x128xbf16> to vector<8x128xbf16>
    %222 = vector.shape_cast %218 : vector<8x128xbf16> to vector<1x8x128xbf16>
    tpu.vector_store %arg4[%219, %c0_52, %c0_53], %222 {strides = array<i32>} : memref<8x8x128xbf16, #tpu.memory_space<vmem>>, vector<1x8x128xbf16>,
    %c6_i32 = arith.constant 6 : i32
    %223 = arith.index_cast %c6_i32 : i32 to index
    %c0_54 = arith.constant 0 : index
    %c0_55 = arith.constant 0 : index
    %224 = vector.load %arg2[%223, %c0_54, %c0_55] : memref<8x8x512xbf16, #tpu.memory_space<vmem>>, vector<1x8x512xbf16>
    %225 = vector.shape_cast %224 : vector<1x8x512xbf16> to vector<8x512xbf16>
    %226 = arith.extf %225 : vector<8x512xbf16> to vector<8x512xf32>
    %cst_56 = arith.constant dense<0.000000e+00> : vector<8x512xf32>
    %227 = tpu.matmul %218, %3, %cst_56 {dimension_numbers = #tpu.dot_dimension_numbers<[1], [0], [0], [1], [0, 0, 1, 1], [], []>} : vector<8x128xbf16>, vector<128x512xbf16>, vector<8x512xf32> -> vector<8x512xf32>
    %228 = arith.addf %226, %227 : vector<8x512xf32>
    %229 = vector.extract_strided_slice %228 {offsets = [0, 0], sizes = [8, 128], strides = [1, 1]} : vector<8x512xf32> to vector<8x128xf32>
    %230 = arith.negf %229 : vector<8x128xf32>
    %231 = math.exp %230 : vector<8x128xf32>
    %cst_57 = arith.constant 1.000000e+00 : f32
    %232 = vector.broadcast %cst_57 : f32 to vector<8x128xf32>
    %233 = arith.addf %232, %231 : vector<8x128xf32>
    %234 = arith.divf %232, %233 : vector<8x128xf32>
    %235 = vector.extract_strided_slice %228 {offsets = [0, 128], sizes = [8, 128], strides = [1, 1]} : vector<8x512xf32> to vector<8x128xf32>
    %236 = arith.negf %235 : vector<8x128xf32>
    %237 = math.exp %236 : vector<8x128xf32>
    %cst_58 = arith.constant 1.000000e+00 : f32
    %238 = vector.broadcast %cst_58 : f32 to vector<8x128xf32>
    %239 = arith.addf %238, %237 : vector<8x128xf32>
    %240 = arith.divf %238, %239 : vector<8x128xf32>
    %241 = vector.extract_strided_slice %228 {offsets = [0, 256], sizes = [8, 128], strides = [1, 1]} : vector<8x512xf32> to vector<8x128xf32>
    %242 = math.tanh %241 : vector<8x128xf32>
    %243 = vector.extract_strided_slice %228 {offsets = [0, 384], sizes = [8, 128], strides = [1, 1]} : vector<8x512xf32> to vector<8x128xf32>
    %244 = arith.negf %243 : vector<8x128xf32>
    %245 = math.exp %244 : vector<8x128xf32>
    %cst_59 = arith.constant 1.000000e+00 : f32
    %246 = vector.broadcast %cst_59 : f32 to vector<8x128xf32>
    %247 = arith.addf %246, %245 : vector<8x128xf32>
    %248 = arith.divf %246, %247 : vector<8x128xf32>
    %249 = arith.mulf %240, %215 : vector<8x128xf32>
    %250 = arith.mulf %234, %242 : vector<8x128xf32>
    %251 = arith.addf %249, %250 : vector<8x128xf32>
    %252 = math.tanh %251 : vector<8x128xf32>
    %253 = arith.mulf %248, %252 : vector<8x128xf32>
    %254 = arith.truncf %253 : vector<8x128xf32> to vector<8x128xbf16>
    %255 = arith.index_cast %c6_i32 : i32 to index
    %c0_60 = arith.constant 0 : index
    %c0_61 = arith.constant 0 : index
    %256 = vector.load %arg4[%255, %c0_60, %c0_61] : memref<8x8x128xbf16, #tpu.memory_space<vmem>>, vector<1x8x128xbf16>
    %257 = vector.shape_cast %256 : vector<1x8x128xbf16> to vector<8x128xbf16>
    %258 = vector.shape_cast %254 : vector<8x128xbf16> to vector<1x8x128xbf16>
    tpu.vector_store %arg4[%255, %c0_60, %c0_61], %258 {strides = array<i32>} : memref<8x8x128xbf16, #tpu.memory_space<vmem>>, vector<1x8x128xbf16>,
    %c7_i32 = arith.constant 7 : i32
    %259 = arith.index_cast %c7_i32 : i32 to index
    %c0_62 = arith.constant 0 : index
    %c0_63 = arith.constant 0 : index
    %260 = vector.load %arg2[%259, %c0_62, %c0_63] : memref<8x8x512xbf16, #tpu.memory_space<vmem>>, vector<1x8x512xbf16>
    %261 = vector.shape_cast %260 : vector<1x8x512xbf16> to vector<8x512xbf16>
    %262 = arith.extf %261 : vector<8x512xbf16> to vector<8x512xf32>
    %cst_64 = arith.constant dense<0.000000e+00> : vector<8x512xf32>
    %263 = tpu.matmul %254, %3, %cst_64 {dimension_numbers = #tpu.dot_dimension_numbers<[1], [0], [0], [1], [0, 0, 1, 1], [], []>} : vector<8x128xbf16>, vector<128x512xbf16>, vector<8x512xf32> -> vector<8x512xf32>
    %264 = arith.addf %262, %263 : vector<8x512xf32>
    %265 = vector.extract_strided_slice %264 {offsets = [0, 0], sizes = [8, 128], strides = [1, 1]} : vector<8x512xf32> to vector<8x128xf32>
    %266 = arith.negf %265 : vector<8x128xf32>
    %267 = math.exp %266 : vector<8x128xf32>
    %cst_65 = arith.constant 1.000000e+00 : f32
    %268 = vector.broadcast %cst_65 : f32 to vector<8x128xf32>
    %269 = arith.addf %268, %267 : vector<8x128xf32>
    %270 = arith.divf %268, %269 : vector<8x128xf32>
    %271 = vector.extract_strided_slice %264 {offsets = [0, 128], sizes = [8, 128], strides = [1, 1]} : vector<8x512xf32> to vector<8x128xf32>
    %272 = arith.negf %271 : vector<8x128xf32>
    %273 = math.exp %272 : vector<8x128xf32>
    %cst_66 = arith.constant 1.000000e+00 : f32
    %274 = vector.broadcast %cst_66 : f32 to vector<8x128xf32>
    %275 = arith.addf %274, %273 : vector<8x128xf32>
    %276 = arith.divf %274, %275 : vector<8x128xf32>
    %277 = vector.extract_strided_slice %264 {offsets = [0, 256], sizes = [8, 128], strides = [1, 1]} : vector<8x512xf32> to vector<8x128xf32>
    %278 = math.tanh %277 : vector<8x128xf32>
    %279 = vector.extract_strided_slice %264 {offsets = [0, 384], sizes = [8, 128], strides = [1, 1]} : vector<8x512xf32> to vector<8x128xf32>
    %280 = arith.negf %279 : vector<8x128xf32>
    %281 = math.exp %280 : vector<8x128xf32>
    %cst_67 = arith.constant 1.000000e+00 : f32
    %282 = vector.broadcast %cst_67 : f32 to vector<8x128xf32>
    %283 = arith.addf %282, %281 : vector<8x128xf32>
    %284 = arith.divf %282, %283 : vector<8x128xf32>
    %285 = arith.mulf %276, %251 : vector<8x128xf32>
    %286 = arith.mulf %270, %278 : vector<8x128xf32>
    %287 = arith.addf %285, %286 : vector<8x128xf32>
    %288 = math.tanh %287 : vector<8x128xf32>
    %289 = arith.mulf %284, %288 : vector<8x128xf32>
    %290 = arith.truncf %289 : vector<8x128xf32> to vector<8x128xbf16>
    %291 = arith.index_cast %c7_i32 : i32 to index
    %c0_68 = arith.constant 0 : index
    %c0_69 = arith.constant 0 : index
    %292 = vector.load %arg4[%291, %c0_68, %c0_69] : memref<8x8x128xbf16, #tpu.memory_space<vmem>>, vector<1x8x128xbf16>
    %293 = vector.shape_cast %292 : vector<1x8x128xbf16> to vector<8x128xbf16>
    %294 = vector.shape_cast %290 : vector<8x128xbf16> to vector<1x8x128xbf16>
    tpu.vector_store %arg4[%291, %c0_68, %c0_69], %294 {strides = array<i32>} : memref<8x8x128xbf16, #tpu.memory_space<vmem>>, vector<1x8x128xbf16>,
    %c8_i32 = arith.constant 8 : i32
    %295 = arith.extf %290 : vector<8x128xbf16> to vector<8x128xf32>
    %c0_70 = arith.constant 0 : index
    %c0_71 = arith.constant 0 : index
    %296 = vector.load %arg5[%c0_70, %c0_71] : memref<8x128xf32, #tpu.memory_space<vmem>>, vector<8x128xf32>
    tpu.vector_store %arg5[%c0_70, %c0_71], %295 {strides = array<i32>} : memref<8x128xf32, #tpu.memory_space<vmem>>, vector<8x128xf32>,
    %c0_72 = arith.constant 0 : index
    %c0_73 = arith.constant 0 : index
    %297 = vector.load %arg6[%c0_72, %c0_73] : memref<8x128xf32, #tpu.memory_space<vmem>>, vector<8x128xf32>
    tpu.vector_store %arg6[%c0_72, %c0_73], %287 {strides = array<i32>} : memref<8x128xf32, #tpu.memory_space<vmem>>, vector<8x128xf32>,
    return
  }
  func.func @transform_0(%arg0: i32, %arg1: i32) -> (i32, i32, i32) {
    %c0_i32 = arith.constant 0 : i32
    %c0_i32_0 = arith.constant 0 : i32
    return %arg1, %arg0, %c0_i32 : i32, i32, i32
  }
  func.func @transform_1(%arg0: i32, %arg1: i32) -> (i32, i32) {
    %c0_i32 = arith.constant 0 : i32
    %c0_i32_0 = arith.constant 0 : i32
    %c0_i32_1 = arith.constant 0 : i32
    return %c0_i32, %c0_i32_0 : i32, i32
  }
  func.func @transform_2(%arg0: i32, %arg1: i32) -> (i32, i32, i32) {
    %c0_i32 = arith.constant 0 : i32
    %c0_i32_0 = arith.constant 0 : i32
    return %arg1, %arg0, %c0_i32 : i32, i32, i32
  }
  func.func @transform_3(%arg0: i32, %arg1: i32) -> (i32, i32) {
    %c0_i32 = arith.constant 0 : i32
    %c0_i32_0 = arith.constant 0 : i32
    return %arg0, %c0_i32 : i32, i32
  }
  func.func @transform_4(%arg0: i32, %arg1: i32) -> (i32, i32) {
    %c0_i32 = arith.constant 0 : i32
    %c0_i32_0 = arith.constant 0 : i32
    return %arg0, %c0_i32 : i32, i32
  }
}

</mosaic_0001>

<llo_original>
// kernel: tpu_custom_call.1
$region0: #{tpu_custom_call.1}
  #allocation0 [shape = 'u32[]', space=smem, size = 0x4, offset = 0x4, fixed_abs, tag = 'smem constant byte address 0x4 - core index']
  #allocation1 [shape = 'u32[144,128]{1,0:T(1,128)}', space=vmem, size = 0x12000, scoped, tag = 'internal scratch']
  %s0 = inlined_call_operand.hbm [shape: bf16[8,8,512], index: 0, kind: input, shape index: {}]
  %s1 = inlined_call_operand.hbm [shape: bf16[128,512], index: 1, kind: input, shape index: {}]
  %s2 = inlined_call_operand.hbm [shape: bf16[8,8,128], index: 2, kind: output, shape index: {0}]
  %s3 = inlined_call_operand.hbm [shape: f32[8,128], index: 3, kind: output, shape index: {1}]
  %s4 = inlined_call_operand.hbm [shape: f32[8,128], index: 4, kind: output, shape index: {2}]
  %5 = xla_tuple %s2, %s3, %s4
  %s6 = sld [smem:[#allocation0]]
  $region46: #{tpu_custom_call.1} parent=0
    _
  %s8 = ssub.s32 1, %s6
  %s9 = scalar_select 0, %s8, %s6
  $region1: #{tpu_custom_call.1} parent=0
    #allocation2 [shape = 'u8[65536]{0}', space=vmem, size = 0x10000, scoped, tag = 'input window, operand 0, single buffered']
    #allocation3 [shape = 's32[1]{0}', space=sflag, size = 0x4, scoped, tag = 'scoped memory for tpu_custom_call.1']
    #allocation4 [shape = 's32[1]{0}', space=sflag, size = 0x4, scoped, tag = 'scoped memory for tpu_custom_call.1']
    #allocation5 [shape = 'u8[131072]{0}', space=vmem, size = 0x20000, scoped, tag = 'input window, operand 1, single buffered']
    #allocation6 [shape = 's32[1]{0}', space=sflag, size = 0x4, scoped, tag = 'scoped memory for tpu_custom_call.1']
    #allocation7 [shape = 'u8[16384]{0}', space=vmem, size = 0x4000, scoped, tag = 'output window, operand 0, single buffered']
    #allocation8 [shape = 'u8[4096]{0}', space=vmem, size = 0x1000, scoped, tag = 'output window, operand 1, single buffered']
    #allocation9 [shape = 's32[1]{0}', space=sflag, size = 0x4, scoped, tag = 'scoped memory for tpu_custom_call.1']
    #allocation10 [shape = 'u8[4096]{0}', space=vmem, size = 0x1000, scoped, tag = 'output window, operand 2, single buffered']
    %10 = vsyncpa [#allocation3], 0
    %11 = vsyncpa [#allocation6], 0
    %12 = vsyncpa [#allocation4], 0
    %13 = vsyncpa [#allocation9], 0
    // Predicated region
    $region2: #{tpu_custom_call.1} parent=1 // pred_check
      _
    $region3: #{tpu_custom_call.1} parent=1 // pred_check_branch
      %15 = sbr.rel (0) target = $region5
    $region4: #{tpu_custom_call.1} parent=1 // pred_region
      %s17 = ssub.s32 2048, 2048
      %18 = vsyncadd [#allocation3], %s17
      %s19 = sshll.u32 [#allocation2], 4
      %s20 = int_to_ptr.vmem [resolvable:$true] %s19
      %25 = dma.hbm_to_vmem [thread:$0]  %s0, 2048, %s20, [#allocation3], 256, 256, 16
    $region5: #{tpu_custom_call.1} parent=1 // pred_fallthru
      _
    // Predicated region
    $region6: #{tpu_custom_call.1} parent=1 // pred_check
      _
    $region7: #{tpu_custom_call.1} parent=1 // pred_check_branch
      %27 = sbr.rel (0) target = $region9
    $region8: #{tpu_custom_call.1} parent=1 // pred_region
      %s29 = ssub.s32 4096, 4096
      %30 = vsyncadd [#allocation6], %s29
      %s31 = sshll.u32 [#allocation5], 4
      %s32 = int_to_ptr.vmem [resolvable:$true] %s31
      %37 = dma.hbm_to_vmem [thread:$0]  %s1, 4096, %s32, [#allocation6], 256, 256, 16
    $region9: #{tpu_custom_call.1} parent=1 // pred_fallthru
      _
    // Predicated region
    $region10: #{tpu_custom_call.1} parent=1 // pred_check
      _
    $region11: #{tpu_custom_call.1} parent=1 // pred_check_branch
      %39 = sbr.rel (0) target = $region13
    $region12: #{tpu_custom_call.1} parent=1 // pred_region
      %40 = dma.done [#allocation3], 2048
    $region13: #{tpu_custom_call.1} parent=1 // pred_fallthru
      _
    // Predicated region
    $region14: #{tpu_custom_call.1} parent=1 // pred_check
      _
    $region15: #{tpu_custom_call.1} parent=1 // pred_check_branch
      %42 = sbr.rel (0) target = $region17
    $region16: #{tpu_custom_call.1} parent=1 // pred_region
      %43 = dma.done [#allocation6], 4096
    $region17: #{tpu_custom_call.1} parent=1 // pred_fallthru
      _
    %p45 = scmp.eq.s32.totalorder 0, 0
    // Predicated region
    $region18: #{tpu_custom_call.1} parent=1 // pred_check
      %p46 = pneg %p45
    $region19: #{tpu_custom_call.1} parent=1 // pred_check_branch
      %48 = sbr.rel (%p46) target = $region21
    $region20: #{tpu_custom_call.1} parent=1 // pred_region
      %49 = vst [vmem:[#allocation8] sm:$0xff] 0.0
      %50 = vst [vmem:[#allocation10] sm:$0xff] 0.0
    $region21: #{tpu_custom_call.1} parent=1 // pred_fallthru
      _
    %v51 = vld [vmem:[#allocation5] sm:$0xff]
    %v52 = vld [vmem:[#allocation5 + $0x8] sm:$0xff]
    %v53 = vld [vmem:[#allocation5 + $0x10] sm:$0xff]
    %v54 = vld [vmem:[#allocation5 + $0x18] sm:$0xff]
    %v55 = vld [vmem:[#allocation5 + $0x20] sm:$0xff]
    %v56 = vld [vmem:[#allocation5 + $0x28] sm:$0xff]
    %v57 = vld [vmem:[#allocation5 + $0x30] sm:$0xff]
    %v58 = vld [vmem:[#allocation5 + $0x38] sm:$0xff]
    %v59 = vld [vmem:[#allocation5 + $0x40] sm:$0xff]
    %v60 = vld [vmem:[#allocation5 + $0x48] sm:$0xff]
    %v61 = vld [vmem:[#allocation5 + $0x50] sm:$0xff]
    %v62 = vld [vmem:[#allocation5 + $0x58] sm:$0xff]
    %v63 = vld [vmem:[#allocation5 + $0x60] sm:$0xff]
    %v64 = vld [vmem:[#allocation5 + $0x68] sm:$0xff]
    %v65 = vld [vmem:[#allocation5 + $0x70] sm:$0xff]
    %v66 = vld [vmem:[#allocation5 + $0x78] sm:$0xff]
    %v67 = vld [vmem:[#allocation5 + $0x80] sm:$0xff]
    %v68 = vld [vmem:[#allocation5 + $0x88] sm:$0xff]
    %v69 = vld [vmem:[#allocation5 + $0x90] sm:$0xff]
    %v70 = vld [vmem:[#allocation5 + $0x98] sm:$0xff]
    %v71 = vld [vmem:[#allocation5 + $0xa0] sm:$0xff]
    %v72 = vld [vmem:[#allocation5 + $0xa8] sm:$0xff]
    %v73 = vld [vmem:[#allocation5 + $0xb0] sm:$0xff]
    %v74 = vld [vmem:[#allocation5 + $0xb8] sm:$0xff]
    %v75 = vld [vmem:[#allocation5 + $0xc0] sm:$0xff]
    %v76 = vld [vmem:[#allocation5 + $0xc8] sm:$0xff]
    %v77 = vld [vmem:[#allocation5 + $0xd0] sm:$0xff]
    %v78 = vld [vmem:[#allocation5 + $0xd8] sm:$0xff]
    %v79 = vld [vmem:[#allocation5 + $0xe0] sm:$0xff]
    %v80 = vld [vmem:[#allocation5 + $0xe8] sm:$0xff]
    %v81 = vld [vmem:[#allocation5 + $0xf0] sm:$0xff]
    %v82 = vld [vmem:[#allocation5 + $0xf8] sm:$0xff]
    %v83 = vld [vmem:[#allocation8] sm:$0xff]
    %v84 = vpack.c.bf16 %v83, %v83
    %v85 = vld [vmem:[#allocation10] sm:$0xff]
    %v86 = vld [vmem:[#allocation2] sm:$0xff]
    %v87 = vld [vmem:[#allocation2 + $0x8] sm:$0xff]
    %v88 = vunpack.c.l.bf16 %v86
    %v89 = vunpack.c.h.bf16 %v86
    %v90 = vunpack.c.l.bf16 %v87
    %v91 = vunpack.c.h.bf16 %v87
    %v124 = vunpack.c.l.b16 %v51
    %v125 = vunpack.c.h.b16 %v51
    %v126 = vunpack.c.l.b16 %v52
    %v127 = vunpack.c.h.b16 %v52
    %v128 = vunpack.c.l.b16 %v53
    %v129 = vunpack.c.h.b16 %v53
    %v130 = vunpack.c.l.b16 %v54
    %v131 = vunpack.c.h.b16 %v54
    %v132 = vunpack.c.l.b16 %v55
    %v133 = vunpack.c.h.b16 %v55
    %v134 = vunpack.c.l.b16 %v56
    %v135 = vunpack.c.h.b16 %v56
    %v136 = vunpack.c.l.b16 %v57
    %v137 = vunpack.c.h.b16 %v57
    %v138 = vunpack.c.l.b16 %v58
    %v139 = vunpack.c.h.b16 %v58
    %v140 = vunpack.c.l.b16 %v59
    %v141 = vunpack.c.h.b16 %v59
    %v142 = vunpack.c.l.b16 %v60
    %v143 = vunpack.c.h.b16 %v60
    %v144 = vunpack.c.l.b16 %v61
    %v145 = vunpack.c.h.b16 %v61
    %v146 = vunpack.c.l.b16 %v62
    %v147 = vunpack.c.h.b16 %v62
    %v148 = vunpack.c.l.b16 %v63
    %v149 = vunpack.c.h.b16 %v63
    %v150 = vunpack.c.l.b16 %v64
    %v151 = vunpack.c.h.b16 %v64
    %v152 = vunpack.c.l.b16 %v65
    %v153 = vunpack.c.h.b16 %v65
    %v154 = vunpack.c.l.b16 %v66
    %v155 = vunpack.c.h.b16 %v66
    %v156 = vunpack.c.l.b16 %v67
    %v157 = vunpack.c.h.b16 %v67
    %v158 = vunpack.c.l.b16 %v68
    %v159 = vunpack.c.h.b16 %v68
    %v160 = vunpack.c.l.b16 %v69
    %v161 = vunpack.c.h.b16 %v69
    %v162 = vunpack.c.l.b16 %v70
    %v163 = vunpack.c.h.b16 %v70
    %v164 = vunpack.c.l.b16 %v71
    %v165 = vunpack.c.h.b16 %v71
    %v166 = vunpack.c.l.b16 %v72
    %v167 = vunpack.c.h.b16 %v72
    %v168 = vunpack.c.l.b16 %v73
    %v169 = vunpack.c.h.b16 %v73
    %v170 = vunpack.c.l.b16 %v74
    %v171 = vunpack.c.h.b16 %v74
    %v172 = vunpack.c.l.b16 %v75
    %v173 = vunpack.c.h.b16 %v75
    %v174 = vunpack.c.l.b16 %v76
    %v175 = vunpack.c.h.b16 %v76
    %v176 = vunpack.c.l.b16 %v77
    %v177 = vunpack.c.h.b16 %v77
    %v178 = vunpack.c.l.b16 %v78
    %v179 = vunpack.c.h.b16 %v78
    %v180 = vunpack.c.l.b16 %v79
    %v181 = vunpack.c.h.b16 %v79
    %v182 = vunpack.c.l.b16 %v80
    %v183 = vunpack.c.h.b16 %v80
    %v184 = vunpack.c.l.b16 %v81
    %v185 = vunpack.c.h.b16 %v81
    %v186 = vunpack.c.l.b16 %v82
    %v187 = vunpack.c.h.b16 %v82
    %v188 = vpack.c.b16 %v128, %v124
    %v189 = vpack.c.b16 %v129, %v125
    %v190 = vpack.c.b16 %v130, %v126
    %v191 = vpack.c.b16 %v131, %v127
    %v192 = vpack.c.b16 %v136, %v132
    %v193 = vpack.c.b16 %v137, %v133
    %v194 = vpack.c.b16 %v138, %v134
    %v195 = vpack.c.b16 %v139, %v135
    %v196 = vpack.c.b16 %v144, %v140
    %v197 = vpack.c.b16 %v145, %v141
    %v198 = vpack.c.b16 %v146, %v142
    %v199 = vpack.c.b16 %v147, %v143
    %v200 = vpack.c.b16 %v152, %v148
    %v201 = vpack.c.b16 %v153, %v149
    %v202 = vpack.c.b16 %v154, %v150
    %v203 = vpack.c.b16 %v155, %v151
    %v204 = vpack.c.b16 %v160, %v156
    %v205 = vpack.c.b16 %v161, %v157
    %v206 = vpack.c.b16 %v162, %v158
    %v207 = vpack.c.b16 %v163, %v159
    %v208 = vpack.c.b16 %v168, %v164
    %v209 = vpack.c.b16 %v169, %v165
    %v210 = vpack.c.b16 %v170, %v166
    %v211 = vpack.c.b16 %v171, %v167
    %v212 = vpack.c.b16 %v176, %v172
    %v213 = vpack.c.b16 %v177, %v173
    %v214 = vpack.c.b16 %v178, %v174
    %v215 = vpack.c.b16 %v179, %v175
    %v216 = vpack.c.b16 %v184, %v180
    %v217 = vpack.c.b16 %v185, %v181
    %v218 = vpack.c.b16 %v186, %v182
    %v219 = vpack.c.b16 %v187, %v183
    %252 = vmatprep.subr.bf16.mxu0 %v189
    %253 = vmatpush1.bf16.msra.mxu0 %v188
    %254 = vmatprep.subr.bf16.mxu0 %v193
    %255 = vmatpush1.bf16.msra.mxu0 %v192
    %256 = vmatprep.subr.bf16.mxu0 %v197
    %257 = vmatpush1.bf16.msra.mxu0 %v196
    %258 = vmatprep.subr.bf16.mxu0 %v201
    %259 = vmatpush1.bf16.msra.mxu0 %v200
    %260 = vmatprep.subr.bf16.mxu0 %v205
    %261 = vmatpush1.bf16.msra.mxu0 %v204
    %262 = vmatprep.subr.bf16.mxu0 %v209
    %263 = vmatpush1.bf16.msra.mxu0 %v208
    %264 = vmatprep.subr.bf16.mxu0 %v213
    %265 = vmatpush1.bf16.msra.mxu0 %v212
    %266 = vmatprep.subr.bf16.mxu0 %v217
    %267 = vmatpush1.bf16.msra.mxu0 %v216
    %268 = vmatprep.subr.bf16.mxu0 0
    %269 = vmatpush1.bf16.msra.mxu0 0
    %270 = vmatprep.subr.bf16.mxu0 0
    %271 = vmatpush1.bf16.msra.mxu0 0
    %272 = vmatprep.subr.bf16.mxu0 0
    %273 = vmatpush1.bf16.msra.mxu0 0
    %274 = vmatprep.subr.bf16.mxu0 0
    %275 = vmatpush1.bf16.msra.mxu0 0
    %276 = vmatprep.subr.bf16.mxu0 0
    %277 = vmatpush1.bf16.msra.mxu0 0
    %278 = vmatprep.subr.bf16.mxu0 0
    %279 = vmatpush1.bf16.msra.mxu0 0
    %280 = vmatprep.subr.bf16.mxu0 0
    %281 = vmatpush1.bf16.msra.mxu0 0
    %282 = vmatprep.subr.bf16.mxu0 0
    %283 = vmatpush1.bf16.msra.mxu0 0
    %284 = vmatprep.mubr.bf16.mxu0 0
    %285 = vmatmul.mubr.bf16.gmra.mrb[0].mxu0 %v84
    %v286 = vpop.f32.mrb[0].mxu0
    %v287 = vadd.f32 0.0, %v286
    %v288 = vpop.f32.mrb[0].mxu0
    %v289 = vadd.f32 0.0, %v288
    %v290 = vpop.f32.mrb[0].mxu0
    %v291 = vpop.f32.mrb[0].mxu0
    %292 = vdwg.mxu0
    %293 = vmatprep.subr.bf16.mxu0 %v191
    %294 = vmatpush1.bf16.msra.mxu0 %v190
    %295 = vmatprep.subr.bf16.mxu0 %v195
    %296 = vmatpush1.bf16.msra.mxu0 %v194
    %297 = vmatprep.subr.bf16.mxu0 %v199
    %298 = vmatpush1.bf16.msra.mxu0 %v198
    %299 = vmatprep.subr.bf16.mxu0 %v203
    %300 = vmatpush1.bf16.msra.mxu0 %v202
    %301 = vmatprep.subr.bf16.mxu0 %v207
    %302 = vmatpush1.bf16.msra.mxu0 %v206
    %303 = vmatprep.subr.bf16.mxu0 %v211
    %304 = vmatpush1.bf16.msra.mxu0 %v210
    %305 = vmatprep.subr.bf16.mxu0 %v215
    %306 = vmatpush1.bf16.msra.mxu0 %v214
    %307 = vmatprep.subr.bf16.mxu0 %v219
    %308 = vmatpush1.bf16.msra.mxu0 %v218
    %309 = vmatprep.subr.bf16.mxu0 0
    %310 = vmatpush1.bf16.msra.mxu0 0
    %311 = vmatprep.subr.bf16.mxu0 0
    %312 = vmatpush1.bf16.msra.mxu0 0
    %313 = vmatprep.subr.bf16.mxu0 0
    %314 = vmatpush1.bf16.msra.mxu0 0
    %315 = vmatprep.subr.bf16.mxu0 0
    %316 = vmatpush1.bf16.msra.mxu0 0
    %317 = vmatprep.subr.bf16.mxu0 0
    %318 = vmatpush1.bf16.msra.mxu0 0
    %319 = vmatprep.subr.bf16.mxu0 0
    %320 = vmatpush1.bf16.msra.mxu0 0
    %321 = vmatprep.subr.bf16.mxu0 0
    %322 = vmatpush1.bf16.msra.mxu0 0
    %323 = vmatprep.subr.bf16.mxu0 0
    %324 = vmatpush1.bf16.msra.mxu0 0
    %325 = vmatprep.mubr.bf16.mxu0 0
    %326 = vmatmul.mubr.bf16.gmra.mrb[0].mxu0 %v84
    %v327 = vpop.f32.mrb[0].mxu0
    %v328 = vadd.f32 0.0, %v327
    %v329 = vpop.f32.mrb[0].mxu0
    %v330 = vadd.f32 0.0, %v329
    %v331 = vpop.f32.mrb[0].mxu0
    %v332 = vpop.f32.mrb[0].mxu0
    %333 = vdwg.mxu0
    %v334 = vadd.f32 %v88, %v287
    %v335 = vadd.f32 %v89, %v289
    %v336 = vadd.f32 %v90, %v328
    %v337 = vadd.f32 %v91, %v330
    %v338 = vxor.u32 %v334, 2147483648
    %v339 = vmul.f32 %v338, 1.442695
    %v340 = vpow.pop %v339
    %v341 = vadd.f32 %v340, 1.0
    %v342 = vrcp.pop %v341
    %v343 = vmul.f32 1.0, %v342
    %v344 = vxor.u32 %v335, 2147483648
    %v345 = vmul.f32 %v344, 1.442695
    %v346 = vpow.pop %v345
    %v347 = vadd.f32 %v346, 1.0
    %v348 = vrcp.pop %v347
    %v349 = vmul.f32 1.0, %v348
    %v350 = vtanh.pop %v336
    %v351 = vxor.u32 %v337, 2147483648
    %v352 = vmul.f32 %v351, 1.442695
    %v353 = vpow.pop %v352
    %v354 = vadd.f32 %v353, 1.0
    %v355 = vrcp.pop %v354
    %v356 = vmul.f32 1.0, %v355
    %v357 = vmul.f32 %v349, %v85
    %v358 = vmul.f32 %v343, %v350
    %v359 = vadd.f32 %v357, %v358
    %v360 = vtanh.pop %v359
    %v361 = vmul.f32 %v356, %v360
    %v362 = vpack.c.bf16 %v361, %v361
    %363 = vst [vmem:[#allocation7] sm:$0xf] %v362
    %s364 = scalar_lea.vmem [#allocation2], 16
    %v365 = vld [vmem:[%s364] sm:$0xff]
    %v366 = vld [vmem:[%s364 + $0x8] sm:$0xff]
    %v367 = vunpack.c.l.bf16 %v365
    %v368 = vunpack.c.h.bf16 %v365
    %v369 = vunpack.c.l.bf16 %v366
    %v370 = vunpack.c.h.bf16 %v366
    %371 = vmatprep.subr.bf16.mxu0 %v189
    %372 = vmatpush1.bf16.msra.mxu0 %v188
    %373 = vmatprep.subr.bf16.mxu0 %v193
    %374 = vmatpush1.bf16.msra.mxu0 %v192
    %375 = vmatprep.subr.bf16.mxu0 %v197
    %376 = vmatpush1.bf16.msra.mxu0 %v196
    %377 = vmatprep.subr.bf16.mxu0 %v201
    %378 = vmatpush1.bf16.msra.mxu0 %v200
    %379 = vmatprep.subr.bf16.mxu0 %v205
    %380 = vmatpush1.bf16.msra.mxu0 %v204
    %381 = vmatprep.subr.bf16.mxu0 %v209
    %382 = vmatpush1.bf16.msra.mxu0 %v208
    %383 = vmatprep.subr.bf16.mxu0 %v213
    %384 = vmatpush1.bf16.msra.mxu0 %v212
    %385 = vmatprep.subr.bf16.mxu0 %v217
    %386 = vmatpush1.bf16.msra.mxu0 %v216
    %387 = vmatprep.subr.bf16.mxu0 0
    %388 = vmatpush1.bf16.msra.mxu0 0
    %389 = vmatprep.subr.bf16.mxu0 0
    %390 = vmatpush1.bf16.msra.mxu0 0
    %391 = vmatprep.subr.bf16.mxu0 0
    %392 = vmatpush1.bf16.msra.mxu0 0
    %393 = vmatprep.subr.bf16.mxu0 0
    %394 = vmatpush1.bf16.msra.mxu0 0
    %395 = vmatprep.subr.bf16.mxu0 0
    %396 = vmatpush1.bf16.msra.mxu0 0
    %397 = vmatprep.subr.bf16.mxu0 0
    %398 = vmatpush1.bf16.msra.mxu0 0
    %399 = vmatprep.subr.bf16.mxu0 0
    %400 = vmatpush1.bf16.msra.mxu0 0
    %401 = vmatprep.subr.bf16.mxu0 0
    %402 = vmatpush1.bf16.msra.mxu0 0
    %403 = vmatprep.mubr.bf16.mxu0 0
    %404 = vmatmul.mubr.bf16.gmra.mrb[0].mxu0 %v362
    %v405 = vpop.f32.mrb[0].mxu0
    %v406 = vadd.f32 0.0, %v405
    %v407 = vpop.f32.mrb[0].mxu0
    %v408 = vadd.f32 0.0, %v407
    %v409 = vpop.f32.mrb[0].mxu0
    %v410 = vpop.f32.mrb[0].mxu0
    %411 = vdwg.mxu0
    %412 = vmatprep.subr.bf16.mxu0 %v191
    %413 = vmatpush1.bf16.msra.mxu0 %v190
    %414 = vmatprep.subr.bf16.mxu0 %v195
    %415 = vmatpush1.bf16.msra.mxu0 %v194
    %416 = vmatprep.subr.bf16.mxu0 %v199
    %417 = vmatpush1.bf16.msra.mxu0 %v198
    %418 = vmatprep.subr.bf16.mxu0 %v203
    %419 = vmatpush1.bf16.msra.mxu0 %v202
    %420 = vmatprep.subr.bf16.mxu0 %v207
    %421 = vmatpush1.bf16.msra.mxu0 %v206
    %422 = vmatprep.subr.bf16.mxu0 %v211
    %423 = vmatpush1.bf16.msra.mxu0 %v210
    %424 = vmatprep.subr.bf16.mxu0 %v215
    %425 = vmatpush1.bf16.msra.mxu0 %v214
    %426 = vmatprep.subr.bf16.mxu0 %v219
    %427 = vmatpush1.bf16.msra.mxu0 %v218
    %428 = vmatprep.subr.bf16.mxu0 0
    %429 = vmatpush1.bf16.msra.mxu0 0
    %430 = vmatprep.subr.bf16.mxu0 0
    %431 = vmatpush1.bf16.msra.mxu0 0
    %432 = vmatprep.subr.bf16.mxu0 0
    %433 = vmatpush1.bf16.msra.mxu0 0
    %434 = vmatprep.subr.bf16.mxu0 0
    %435 = vmatpush1.bf16.msra.mxu0 0
    %436 = vmatprep.subr.bf16.mxu0 0
    %437 = vmatpush1.bf16.msra.mxu0 0
    %438 = vmatprep.subr.bf16.mxu0 0
    %439 = vmatpush1.bf16.msra.mxu0 0
    %440 = vmatprep.subr.bf16.mxu0 0
    %441 = vmatpush1.bf16.msra.mxu0 0
    %442 = vmatprep.subr.bf16.mxu0 0
    %443 = vmatpush1.bf16.msra.mxu0 0
    %444 = vmatprep.mubr.bf16.mxu0 0
    %445 = vmatmul.mubr.bf16.gmra.mrb[0].mxu0 %v362
    %v446 = vpop.f32.mrb[0].mxu0
    %v447 = vadd.f32 0.0, %v446
    %v448 = vpop.f32.mrb[0].mxu0
    %v449 = vadd.f32 0.0, %v448
    %v450 = vpop.f32.mrb[0].mxu0
    %v451 = vpop.f32.mrb[0].mxu0
    %452 = vdwg.mxu0
    %v453 = vadd.f32 %v367, %v406
    %v454 = vadd.f32 %v368, %v408
    %v455 = vadd.f32 %v369, %v447
    %v456 = vadd.f32 %v370, %v449
    %v457 = vxor.u32 %v453, 2147483648
    %v458 = vmul.f32 %v457, 1.442695
    %v459 = vpow.pop %v458
    %v460 = vadd.f32 %v459, 1.0
    %v461 = vrcp.pop %v460
    %v462 = vmul.f32 1.0, %v461
    %v463 = vxor.u32 %v454, 2147483648
    %v464 = vmul.f32 %v463, 1.442695
    %v465 = vpow.pop %v464
    %v466 = vadd.f32 %v465, 1.0
    %v467 = vrcp.pop %v466
    %v468 = vmul.f32 1.0, %v467
    %v469 = vtanh.pop %v455
    %v470 = vxor.u32 %v456, 2147483648
    %v471 = vmul.f32 %v470, 1.442695
    %v472 = vpow.pop %v471
    %v473 = vadd.f32 %v472, 1.0
    %v474 = vrcp.pop %v473
    %v475 = vmul.f32 1.0, %v474
    %v476 = vmul.f32 %v468, %v359
    %v477 = vmul.f32 %v462, %v469
    %v478 = vadd.f32 %v476, %v477
    %v479 = vtanh.pop %v478
    %v480 = vmul.f32 %v475, %v479
    %v481 = vpack.c.bf16 %v480, %v480
    %s482 = scalar_lea.vmem [#allocation7], 4
    %483 = vst [vmem:[%s482] sm:$0xf] %v481
    %s484 = scalar_lea.vmem [#allocation2], 32
    %v485 = vld [vmem:[%s484] sm:$0xff]
    %v486 = vld [vmem:[%s484 + $0x8] sm:$0xff]
    %v487 = vunpack.c.l.bf16 %v485
    %v488 = vunpack.c.h.bf16 %v485
    %v489 = vunpack.c.l.bf16 %v486
    %v490 = vunpack.c.h.bf16 %v486
    %491 = vmatprep.subr.bf16.mxu0 %v189
    %492 = vmatpush1.bf16.msra.mxu0 %v188
    %493 = vmatprep.subr.bf16.mxu0 %v193
    %494 = vmatpush1.bf16.msra.mxu0 %v192
    %495 = vmatprep.subr.bf16.mxu0 %v197
    %496 = vmatpush1.bf16.msra.mxu0 %v196
    %497 = vmatprep.subr.bf16.mxu0 %v201
    %498 = vmatpush1.bf16.msra.mxu0 %v200
    %499 = vmatprep.subr.bf16.mxu0 %v205
    %500 = vmatpush1.bf16.msra.mxu0 %v204
    %501 = vmatprep.subr.bf16.mxu0 %v209
    %502 = vmatpush1.bf16.msra.mxu0 %v208
    %503 = vmatprep.subr.bf16.mxu0 %v213
    %504 = vmatpush1.bf16.msra.mxu0 %v212
    %505 = vmatprep.subr.bf16.mxu0 %v217
    %506 = vmatpush1.bf16.msra.mxu0 %v216
    %507 = vmatprep.subr.bf16.mxu0 0
    %508 = vmatpush1.bf16.msra.mxu0 0
    %509 = vmatprep.subr.bf16.mxu0 0
    %510 = vmatpush1.bf16.msra.mxu0 0
    %511 = vmatprep.subr.bf16.mxu0 0
    %512 = vmatpush1.bf16.msra.mxu0 0
    %513 = vmatprep.subr.bf16.mxu0 0
    %514 = vmatpush1.bf16.msra.mxu0 0
    %515 = vmatprep.subr.bf16.mxu0 0
    %516 = vmatpush1.bf16.msra.mxu0 0
    %517 = vmatprep.subr.bf16.mxu0 0
    %518 = vmatpush1.bf16.msra.mxu0 0
    %519 = vmatprep.subr.bf16.mxu0 0
    %520 = vmatpush1.bf16.msra.mxu0 0
    %521 = vmatprep.subr.bf16.mxu0 0
    %522 = vmatpush1.bf16.msra.mxu0 0
    %523 = vmatprep.mubr.bf16.mxu0 0
    %524 = vmatmul.mubr.bf16.gmra.mrb[0].mxu0 %v481
    %v525 = vpop.f32.mrb[0].mxu0
    %v526 = vadd.f32 0.0, %v525
    %v527 = vpop.f32.mrb[0].mxu0
    %v528 = vadd.f32 0.0, %v527
    %v529 = vpop.f32.mrb[0].mxu0
    %v530 = vpop.f32.mrb[0].mxu0
    %531 = vdwg.mxu0
    %532 = vmatprep.subr.bf16.mxu0 %v191
    %533 = vmatpush1.bf16.msra.mxu0 %v190
    %534 = vmatprep.subr.bf16.mxu0 %v195
    %535 = vmatpush1.bf16.msra.mxu0 %v194
    %536 = vmatprep.subr.bf16.mxu0 %v199
    %537 = vmatpush1.bf16.msra.mxu0 %v198
    %538 = vmatprep.subr.bf16.mxu0 %v203
    %539 = vmatpush1.bf16.msra.mxu0 %v202
    %540 = vmatprep.subr.bf16.mxu0 %v207
    %541 = vmatpush1.bf16.msra.mxu0 %v206
    %542 = vmatprep.subr.bf16.mxu0 %v211
    %543 = vmatpush1.bf16.msra.mxu0 %v210
    %544 = vmatprep.subr.bf16.mxu0 %v215
    %545 = vmatpush1.bf16.msra.mxu0 %v214
    %546 = vmatprep.subr.bf16.mxu0 %v219
    %547 = vmatpush1.bf16.msra.mxu0 %v218
    %548 = vmatprep.subr.bf16.mxu0 0
    %549 = vmatpush1.bf16.msra.mxu0 0
    %550 = vmatprep.subr.bf16.mxu0 0
    %551 = vmatpush1.bf16.msra.mxu0 0
    %552 = vmatprep.subr.bf16.mxu0 0
    %553 = vmatpush1.bf16.msra.mxu0 0
    %554 = vmatprep.subr.bf16.mxu0 0
    %555 = vmatpush1.bf16.msra.mxu0 0
    %556 = vmatprep.subr.bf16.mxu0 0
    %557 = vmatpush1.bf16.msra.mxu0 0
    %558 = vmatprep.subr.bf16.mxu0 0
    %559 = vmatpush1.bf16.msra.mxu0 0
    %560 = vmatprep.subr.bf16.mxu0 0
    %561 = vmatpush1.bf16.msra.mxu0 0
    %562 = vmatprep.subr.bf16.mxu0 0
    %563 = vmatpush1.bf16.msra.mxu0 0
    %564 = vmatprep.mubr.bf16.mxu0 0
    %565 = vmatmul.mubr.bf16.gmra.mrb[0].mxu0 %v481
    %v566 = vpop.f32.mrb[0].mxu0
    %v567 = vadd.f32 0.0, %v566
    %v568 = vpop.f32.mrb[0].mxu0
    %v569 = vadd.f32 0.0, %v568
    %v570 = vpop.f32.mrb[0].mxu0
    %v571 = vpop.f32.mrb[0].mxu0
    %572 = vdwg.mxu0
    %v573 = vadd.f32 %v487, %v526
    %v574 = vadd.f32 %v488, %v528
    %v575 = vadd.f32 %v489, %v567
    %v576 = vadd.f32 %v490, %v569
    %v577 = vxor.u32 %v573, 2147483648
    %v578 = vmul.f32 %v577, 1.442695
    %v579 = vpow.pop %v578
    %v580 = vadd.f32 %v579, 1.0
    %v581 = vrcp.pop %v580
    %v582 = vmul.f32 1.0, %v581
    %v583 = vxor.u32 %v574, 2147483648
    %v584 = vmul.f32 %v583, 1.442695
    %v585 = vpow.pop %v584
    %v586 = vadd.f32 %v585, 1.0
    %v587 = vrcp.pop %v586
    %v588 = vmul.f32 1.0, %v587
    %v589 = vtanh.pop %v575
    %v590 = vxor.u32 %v576, 2147483648
    %v591 = vmul.f32 %v590, 1.442695
    %v592 = vpow.pop %v591
    %v593 = vadd.f32 %v592, 1.0
    %v594 = vrcp.pop %v593
    %v595 = vmul.f32 1.0, %v594
    %v596 = vmul.f32 %v588, %v478
    %v597 = vmul.f32 %v582, %v589
    %v598 = vadd.f32 %v596, %v597
    %v599 = vtanh.pop %v598
    %v600 = vmul.f32 %v595, %v599
    %v601 = vpack.c.bf16 %v600, %v600
    %s602 = scalar_lea.vmem [#allocation7], 8
    %603 = vst [vmem:[%s602] sm:$0xf] %v601
    %s604 = scalar_lea.vmem [#allocation2], 48
    %v605 = vld [vmem:[%s604] sm:$0xff]
    %v606 = vld [vmem:[%s604 + $0x8] sm:$0xff]
    %v607 = vunpack.c.l.bf16 %v605
    %v608 = vunpack.c.h.bf16 %v605
    %v609 = vunpack.c.l.bf16 %v606
    %v610 = vunpack.c.h.bf16 %v606
    %611 = vmatprep.subr.bf16.mxu0 %v189
    %612 = vmatpush1.bf16.msra.mxu0 %v188
    %613 = vmatprep.subr.bf16.mxu0 %v193
    %614 = vmatpush1.bf16.msra.mxu0 %v192
    %615 = vmatprep.subr.bf16.mxu0 %v197
    %616 = vmatpush1.bf16.msra.mxu0 %v196
    %617 = vmatprep.subr.bf16.mxu0 %v201
    %618 = vmatpush1.bf16.msra.mxu0 %v200
    %619 = vmatprep.subr.bf16.mxu0 %v205
    %620 = vmatpush1.bf16.msra.mxu0 %v204
    %621 = vmatprep.subr.bf16.mxu0 %v209
    %622 = vmatpush1.bf16.msra.mxu0 %v208
    %623 = vmatprep.subr.bf16.mxu0 %v213
    %624 = vmatpush1.bf16.msra.mxu0 %v212
    %625 = vmatprep.subr.bf16.mxu0 %v217
    %626 = vmatpush1.bf16.msra.mxu0 %v216
    %627 = vmatprep.subr.bf16.mxu0 0
    %628 = vmatpush1.bf16.msra.mxu0 0
    %629 = vmatprep.subr.bf16.mxu0 0
    %630 = vmatpush1.bf16.msra.mxu0 0
    %631 = vmatprep.subr.bf16.mxu0 0
    %632 = vmatpush1.bf16.msra.mxu0 0
    %633 = vmatprep.subr.bf16.mxu0 0
    %634 = vmatpush1.bf16.msra.mxu0 0
    %635 = vmatprep.subr.bf16.mxu0 0
    %636 = vmatpush1.bf16.msra.mxu0 0
    %637 = vmatprep.subr.bf16.mxu0 0
    %638 = vmatpush1.bf16.msra.mxu0 0
    %639 = vmatprep.subr.bf16.mxu0 0
    %640 = vmatpush1.bf16.msra.mxu0 0
    %641 = vmatprep.subr.bf16.mxu0 0
    %642 = vmatpush1.bf16.msra.mxu0 0
    %643 = vmatprep.mubr.bf16.mxu0 0
    %644 = vmatmul.mubr.bf16.gmra.mrb[0].mxu0 %v601
    %v645 = vpop.f32.mrb[0].mxu0
    %v646 = vadd.f32 0.0, %v645
    %v647 = vpop.f32.mrb[0].mxu0
    %v648 = vadd.f32 0.0, %v647
    %v649 = vpop.f32.mrb[0].mxu0
    %v650 = vpop.f32.mrb[0].mxu0
    %651 = vdwg.mxu0
    %652 = vmatprep.subr.bf16.mxu0 %v191
    %653 = vmatpush1.bf16.msra.mxu0 %v190
    %654 = vmatprep.subr.bf16.mxu0 %v195
    %655 = vmatpush1.bf16.msra.mxu0 %v194
    %656 = vmatprep.subr.bf16.mxu0 %v199
    %657 = vmatpush1.bf16.msra.mxu0 %v198
    %658 = vmatprep.subr.bf16.mxu0 %v203
    %659 = vmatpush1.bf16.msra.mxu0 %v202
    %660 = vmatprep.subr.bf16.mxu0 %v207
    %661 = vmatpush1.bf16.msra.mxu0 %v206
    %662 = vmatprep.subr.bf16.mxu0 %v211
    %663 = vmatpush1.bf16.msra.mxu0 %v210
    %664 = vmatprep.subr.bf16.mxu0 %v215
    %665 = vmatpush1.bf16.msra.mxu0 %v214
    %666 = vmatprep.subr.bf16.mxu0 %v219
    %667 = vmatpush1.bf16.msra.mxu0 %v218
    %668 = vmatprep.subr.bf16.mxu0 0
    %669 = vmatpush1.bf16.msra.mxu0 0
    %670 = vmatprep.subr.bf16.mxu0 0
    %671 = vmatpush1.bf16.msra.mxu0 0
    %672 = vmatprep.subr.bf16.mxu0 0
    %673 = vmatpush1.bf16.msra.mxu0 0
    %674 = vmatprep.subr.bf16.mxu0 0
    %675 = vmatpush1.bf16.msra.mxu0 0
    %676 = vmatprep.subr.bf16.mxu0 0
    %677 = vmatpush1.bf16.msra.mxu0 0
    %678 = vmatprep.subr.bf16.mxu0 0
    %679 = vmatpush1.bf16.msra.mxu0 0
    %680 = vmatprep.subr.bf16.mxu0 0
    %681 = vmatpush1.bf16.msra.mxu0 0
    %682 = vmatprep.subr.bf16.mxu0 0
    %683 = vmatpush1.bf16.msra.mxu0 0
    %684 = vmatprep.mubr.bf16.mxu0 0
    %685 = vmatmul.mubr.bf16.gmra.mrb[0].mxu0 %v601
    %v686 = vpop.f32.mrb[0].mxu0
    %v687 = vadd.f32 0.0, %v686
    %v688 = vpop.f32.mrb[0].mxu0
    %v689 = vadd.f32 0.0, %v688
    %v690 = vpop.f32.mrb[0].mxu0
    %v691 = vpop.f32.mrb[0].mxu0
    %692 = vdwg.mxu0
    %v693 = vadd.f32 %v607, %v646
    %v694 = vadd.f32 %v608, %v648
    %v695 = vadd.f32 %v609, %v687
    %v696 = vadd.f32 %v610, %v689
    %v697 = vxor.u32 %v693, 2147483648
    %v698 = vmul.f32 %v697, 1.442695
    %v699 = vpow.pop %v698
    %v700 = vadd.f32 %v699, 1.0
    %v701 = vrcp.pop %v700
    %v702 = vmul.f32 1.0, %v701
    %v703 = vxor.u32 %v694, 2147483648
    %v704 = vmul.f32 %v703, 1.442695
    %v705 = vpow.pop %v704
    %v706 = vadd.f32 %v705, 1.0
    %v707 = vrcp.pop %v706
    %v708 = vmul.f32 1.0, %v707
    %v709 = vtanh.pop %v695
    %v710 = vxor.u32 %v696, 2147483648
    %v711 = vmul.f32 %v710, 1.442695
    %v712 = vpow.pop %v711
    %v713 = vadd.f32 %v712, 1.0
    %v714 = vrcp.pop %v713
    %v715 = vmul.f32 1.0, %v714
    %v716 = vmul.f32 %v708, %v598
    %v717 = vmul.f32 %v702, %v709
    %v718 = vadd.f32 %v716, %v717
    %v719 = vtanh.pop %v718
    %v720 = vmul.f32 %v715, %v719
    %v721 = vpack.c.bf16 %v720, %v720
    %s722 = scalar_lea.vmem [#allocation7], 12
    %723 = vst [vmem:[%s722] sm:$0xf] %v721
    %s724 = scalar_lea.vmem [#allocation2], 64
    %v725 = vld [vmem:[%s724] sm:$0xff]
    %v726 = vld [vmem:[%s724 + $0x8] sm:$0xff]
    %v727 = vunpack.c.l.bf16 %v725
    %v728 = vunpack.c.h.bf16 %v725
    %v729 = vunpack.c.l.bf16 %v726
    %v730 = vunpack.c.h.bf16 %v726
    %731 = vmatprep.subr.bf16.mxu0 %v189
    %732 = vmatpush1.bf16.msra.mxu0 %v188
    %733 = vmatprep.subr.bf16.mxu0 %v193
    %734 = vmatpush1.bf16.msra.mxu0 %v192
    %735 = vmatprep.subr.bf16.mxu0 %v197
    %736 = vmatpush1.bf16.msra.mxu0 %v196
    %737 = vmatprep.subr.bf16.mxu0 %v201
    %738 = vmatpush1.bf16.msra.mxu0 %v200
    %739 = vmatprep.subr.bf16.mxu0 %v205
    %740 = vmatpush1.bf16.msra.mxu0 %v204
    %741 = vmatprep.subr.bf16.mxu0 %v209
    %742 = vmatpush1.bf16.msra.mxu0 %v208
    %743 = vmatprep.subr.bf16.mxu0 %v213
    %744 = vmatpush1.bf16.msra.mxu0 %v212
    %745 = vmatprep.subr.bf16.mxu0 %v217
    %746 = vmatpush1.bf16.msra.mxu0 %v216
    %747 = vmatprep.subr.bf16.mxu0 0
    %748 = vmatpush1.bf16.msra.mxu0 0
    %749 = vmatprep.subr.bf16.mxu0 0
    %750 = vmatpush1.bf16.msra.mxu0 0
    %751 = vmatprep.subr.bf16.mxu0 0
    %752 = vmatpush1.bf16.msra.mxu0 0
    %753 = vmatprep.subr.bf16.mxu0 0
    %754 = vmatpush1.bf16.msra.mxu0 0
    %755 = vmatprep.subr.bf16.mxu0 0
    %756 = vmatpush1.bf16.msra.mxu0 0
    %757 = vmatprep.subr.bf16.mxu0 0
    %758 = vmatpush1.bf16.msra.mxu0 0
    %759 = vmatprep.subr.bf16.mxu0 0
    %760 = vmatpush1.bf16.msra.mxu0 0
    %761 = vmatprep.subr.bf16.mxu0 0
    %762 = vmatpush1.bf16.msra.mxu0 0
    %763 = vmatprep.mubr.bf16.mxu0 0
    %764 = vmatmul.mubr.bf16.gmra.mrb[0].mxu0 %v721
    %v765 = vpop.f32.mrb[0].mxu0
    %v766 = vadd.f32 0.0, %v765
    %v767 = vpop.f32.mrb[0].mxu0
    %v768 = vadd.f32 0.0, %v767
    %v769 = vpop.f32.mrb[0].mxu0
    %v770 = vpop.f32.mrb[0].mxu0
    %771 = vdwg.mxu0
    %772 = vmatprep.subr.bf16.mxu0 %v191
    %773 = vmatpush1.bf16.msra.mxu0 %v190
    %774 = vmatprep.subr.bf16.mxu0 %v195
    %775 = vmatpush1.bf16.msra.mxu0 %v194
    %776 = vmatprep.subr.bf16.mxu0 %v199
    %777 = vmatpush1.bf16.msra.mxu0 %v198
    %778 = vmatprep.subr.bf16.mxu0 %v203
    %779 = vmatpush1.bf16.msra.mxu0 %v202
    %780 = vmatprep.subr.bf16.mxu0 %v207
    %781 = vmatpush1.bf16.msra.mxu0 %v206
    %782 = vmatprep.subr.bf16.mxu0 %v211
    %783 = vmatpush1.bf16.msra.mxu0 %v210
    %784 = vmatprep.subr.bf16.mxu0 %v215
    %785 = vmatpush1.bf16.msra.mxu0 %v214
    %786 = vmatprep.subr.bf16.mxu0 %v219
    %787 = vmatpush1.bf16.msra.mxu0 %v218
    %788 = vmatprep.subr.bf16.mxu0 0
    %789 = vmatpush1.bf16.msra.mxu0 0
    %790 = vmatprep.subr.bf16.mxu0 0
    %791 = vmatpush1.bf16.msra.mxu0 0
    %792 = vmatprep.subr.bf16.mxu0 0
    %793 = vmatpush1.bf16.msra.mxu0 0
    %794 = vmatprep.subr.bf16.mxu0 0
    %795 = vmatpush1.bf16.msra.mxu0 0
    %796 = vmatprep.subr.bf16.mxu0 0
    %797 = vmatpush1.bf16.msra.mxu0 0
    %798 = vmatprep.subr.bf16.mxu0 0
    %799 = vmatpush1.bf16.msra.mxu0 0
    %800 = vmatprep.subr.bf16.mxu0 0
    %801 = vmatpush1.bf16.msra.mxu0 0
    %802 = vmatprep.subr.bf16.mxu0 0
    %803 = vmatpush1.bf16.msra.mxu0 0
    %804 = vmatprep.mubr.bf16.mxu0 0
    %805 = vmatmul.mubr.bf16.gmra.mrb[0].mxu0 %v721
    %v806 = vpop.f32.mrb[0].mxu0
    %v807 = vadd.f32 0.0, %v806
    %v808 = vpop.f32.mrb[0].mxu0
    %v809 = vadd.f32 0.0, %v808
    %v810 = vpop.f32.mrb[0].mxu0
    %v811 = vpop.f32.mrb[0].mxu0
    %812 = vdwg.mxu0
    %v813 = vadd.f32 %v727, %v766
    %v814 = vadd.f32 %v728, %v768
    %v815 = vadd.f32 %v729, %v807
    %v816 = vadd.f32 %v730, %v809
    %v817 = vxor.u32 %v813, 2147483648
    %v818 = vmul.f32 %v817, 1.442695
    %v819 = vpow.pop %v818
    %v820 = vadd.f32 %v819, 1.0
    %v821 = vrcp.pop %v820
    %v822 = vmul.f32 1.0, %v821
    %v823 = vxor.u32 %v814, 2147483648
    %v824 = vmul.f32 %v823, 1.442695
    %v825 = vpow.pop %v824
    %v826 = vadd.f32 %v825, 1.0
    %v827 = vrcp.pop %v826
    %v828 = vmul.f32 1.0, %v827
    %v829 = vtanh.pop %v815
    %v830 = vxor.u32 %v816, 2147483648
    %v831 = vmul.f32 %v830, 1.442695
    %v832 = vpow.pop %v831
    %v833 = vadd.f32 %v832, 1.0
    %v834 = vrcp.pop %v833
    %v835 = vmul.f32 1.0, %v834
    %v836 = vmul.f32 %v828, %v718
    %v837 = vmul.f32 %v822, %v829
    %v838 = vadd.f32 %v836, %v837
    %v839 = vtanh.pop %v838
    %v840 = vmul.f32 %v835, %v839
    %v841 = vpack.c.bf16 %v840, %v840
    %s842 = scalar_lea.vmem [#allocation7], 16
    %843 = vst [vmem:[%s842] sm:$0xf] %v841
    %s844 = scalar_lea.vmem [#allocation2], 80
    %v845 = vld [vmem:[%s844] sm:$0xff]
    %v846 = vld [vmem:[%s844 + $0x8] sm:$0xff]
    %v847 = vunpack.c.l.bf16 %v845
    %v848 = vunpack.c.h.bf16 %v845
    %v849 = vunpack.c.l.bf16 %v846
    %v850 = vunpack.c.h.bf16 %v846
    %851 = vmatprep.subr.bf16.mxu0 %v189
    %852 = vmatpush1.bf16.msra.mxu0 %v188
    %853 = vmatprep.subr.bf16.mxu0 %v193
    %854 = vmatpush1.bf16.msra.mxu0 %v192
    %855 = vmatprep.subr.bf16.mxu0 %v197
    %856 = vmatpush1.bf16.msra.mxu0 %v196
    %857 = vmatprep.subr.bf16.mxu0 %v201
    %858 = vmatpush1.bf16.msra.mxu0 %v200
    %859 = vmatprep.subr.bf16.mxu0 %v205
    %860 = vmatpush1.bf16.msra.mxu0 %v204
    %861 = vmatprep.subr.bf16.mxu0 %v209
    %862 = vmatpush1.bf16.msra.mxu0 %v208
    %863 = vmatprep.subr.bf16.mxu0 %v213
    %864 = vmatpush1.bf16.msra.mxu0 %v212
    %865 = vmatprep.subr.bf16.mxu0 %v217
    %866 = vmatpush1.bf16.msra.mxu0 %v216
    %867 = vmatprep.subr.bf16.mxu0 0
    %868 = vmatpush1.bf16.msra.mxu0 0
    %869 = vmatprep.subr.bf16.mxu0 0
    %870 = vmatpush1.bf16.msra.mxu0 0
    %871 = vmatprep.subr.bf16.mxu0 0
    %872 = vmatpush1.bf16.msra.mxu0 0
    %873 = vmatprep.subr.bf16.mxu0 0
    %874 = vmatpush1.bf16.msra.mxu0 0
    %875 = vmatprep.subr.bf16.mxu0 0
    %876 = vmatpush1.bf16.msra.mxu0 0
    %877 = vmatprep.subr.bf16.mxu0 0
    %878 = vmatpush1.bf16.msra.mxu0 0
    %879 = vmatprep.subr.bf16.mxu0 0
    %880 = vmatpush1.bf16.msra.mxu0 0
    %881 = vmatprep.subr.bf16.mxu0 0
    %882 = vmatpush1.bf16.msra.mxu0 0
    %883 = vmatprep.mubr.bf16.mxu0 0
    %884 = vmatmul.mubr.bf16.gmra.mrb[0].mxu0 %v841
    %v885 = vpop.f32.mrb[0].mxu0
    %v886 = vadd.f32 0.0, %v885
    %v887 = vpop.f32.mrb[0].mxu0
    %v888 = vadd.f32 0.0, %v887
    %v889 = vpop.f32.mrb[0].mxu0
    %v890 = vpop.f32.mrb[0].mxu0
    %891 = vdwg.mxu0
    %892 = vmatprep.subr.bf16.mxu0 %v191
    %893 = vmatpush1.bf16.msra.mxu0 %v190
    %894 = vmatprep.subr.bf16.mxu0 %v195
    %895 = vmatpush1.bf16.msra.mxu0 %v194
    %896 = vmatprep.subr.bf16.mxu0 %v199
    %897 = vmatpush1.bf16.msra.mxu0 %v198
    %898 = vmatprep.subr.bf16.mxu0 %v203
    %899 = vmatpush1.bf16.msra.mxu0 %v202
    %900 = vmatprep.subr.bf16.mxu0 %v207
    %901 = vmatpush1.bf16.msra.mxu0 %v206
    %902 = vmatprep.subr.bf16.mxu0 %v211
    %903 = vmatpush1.bf16.msra.mxu0 %v210
    %904 = vmatprep.subr.bf16.mxu0 %v215
    %905 = vmatpush1.bf16.msra.mxu0 %v214
    %906 = vmatprep.subr.bf16.mxu0 %v219
    %907 = vmatpush1.bf16.msra.mxu0 %v218
    %908 = vmatprep.subr.bf16.mxu0 0
    %909 = vmatpush1.bf16.msra.mxu0 0
    %910 = vmatprep.subr.bf16.mxu0 0
    %911 = vmatpush1.bf16.msra.mxu0 0
    %912 = vmatprep.subr.bf16.mxu0 0
    %913 = vmatpush1.bf16.msra.mxu0 0
    %914 = vmatprep.subr.bf16.mxu0 0
    %915 = vmatpush1.bf16.msra.mxu0 0
    %916 = vmatprep.subr.bf16.mxu0 0
    %917 = vmatpush1.bf16.msra.mxu0 0
    %918 = vmatprep.subr.bf16.mxu0 0
    %919 = vmatpush1.bf16.msra.mxu0 0
    %920 = vmatprep.subr.bf16.mxu0 0
    %921 = vmatpush1.bf16.msra.mxu0 0
    %922 = vmatprep.subr.bf16.mxu0 0
    %923 = vmatpush1.bf16.msra.mxu0 0
    %924 = vmatprep.mubr.bf16.mxu0 0
    %925 = vmatmul.mubr.bf16.gmra.mrb[0].mxu0 %v841
    %v926 = vpop.f32.mrb[0].mxu0
    %v927 = vadd.f32 0.0, %v926
    %v928 = vpop.f32.mrb[0].mxu0
    %v929 = vadd.f32 0.0, %v928
    %v930 = vpop.f32.mrb[0].mxu0
    %v931 = vpop.f32.mrb[0].mxu0
    %932 = vdwg.mxu0
    %v933 = vadd.f32 %v847, %v886
    %v934 = vadd.f32 %v848, %v888
    %v935 = vadd.f32 %v849, %v927
    %v936 = vadd.f32 %v850, %v929
    %v937 = vxor.u32 %v933, 2147483648
    %v938 = vmul.f32 %v937, 1.442695
    %v939 = vpow.pop %v938
    %v940 = vadd.f32 %v939, 1.0
    %v941 = vrcp.pop %v940
    %v942 = vmul.f32 1.0, %v941
    %v943 = vxor.u32 %v934, 2147483648
    %v944 = vmul.f32 %v943, 1.442695
    %v945 = vpow.pop %v944
    %v946 = vadd.f32 %v945, 1.0
    %v947 = vrcp.pop %v946
    %v948 = vmul.f32 1.0, %v947
    %v949 = vtanh.pop %v935
    %v950 = vxor.u32 %v936, 2147483648
    %v951 = vmul.f32 %v950, 1.442695
    %v952 = vpow.pop %v951
    %v953 = vadd.f32 %v952, 1.0
    %v954 = vrcp.pop %v953
    %v955 = vmul.f32 1.0, %v954
    %v956 = vmul.f32 %v948, %v838
    %v957 = vmul.f32 %v942, %v949
    %v958 = vadd.f32 %v956, %v957
    %v959 = vtanh.pop %v958
    %v960 = vmul.f32 %v955, %v959
    %v961 = vpack.c.bf16 %v960, %v960
    %s962 = scalar_lea.vmem [#allocation7], 20
    %963 = vst [vmem:[%s962] sm:$0xf] %v961
    %s964 = scalar_lea.vmem [#allocation2], 96
    %v965 = vld [vmem:[%s964] sm:$0xff]
    %v966 = vld [vmem:[%s964 + $0x8] sm:$0xff]
    %v967 = vunpack.c.l.bf16 %v965
    %v968 = vunpack.c.h.bf16 %v965
    %v969 = vunpack.c.l.bf16 %v966
    %v970 = vunpack.c.h.bf16 %v966
    %971 = vmatprep.subr.bf16.mxu0 %v189
    %972 = vmatpush1.bf16.msra.mxu0 %v188
    %973 = vmatprep.subr.bf16.mxu0 %v193
    %974 = vmatpush1.bf16.msra.mxu0 %v192
    %975 = vmatprep.subr.bf16.mxu0 %v197
    %976 = vmatpush1.bf16.msra.mxu0 %v196
    %977 = vmatprep.subr.bf16.mxu0 %v201
    %978 = vmatpush1.bf16.msra.mxu0 %v200
    %979 = vmatprep.subr.bf16.mxu0 %v205
    %980 = vmatpush1.bf16.msra.mxu0 %v204
    %981 = vmatprep.subr.bf16.mxu0 %v209
    %982 = vmatpush1.bf16.msra.mxu0 %v208
    %983 = vmatprep.subr.bf16.mxu0 %v213
    %984 = vmatpush1.bf16.msra.mxu0 %v212
    %985 = vmatprep.subr.bf16.mxu0 %v217
    %986 = vmatpush1.bf16.msra.mxu0 %v216
    %987 = vmatprep.subr.bf16.mxu0 0
    %988 = vmatpush1.bf16.msra.mxu0 0
    %989 = vmatprep.subr.bf16.mxu0 0
    %990 = vmatpush1.bf16.msra.mxu0 0
    %991 = vmatprep.subr.bf16.mxu0 0
    %992 = vmatpush1.bf16.msra.mxu0 0
    %993 = vmatprep.subr.bf16.mxu0 0
    %994 = vmatpush1.bf16.msra.mxu0 0
    %995 = vmatprep.subr.bf16.mxu0 0
    %996 = vmatpush1.bf16.msra.mxu0 0
    %997 = vmatprep.subr.bf16.mxu0 0
    %998 = vmatpush1.bf16.msra.mxu0 0
    %999 = vmatprep.subr.bf16.mxu0 0
    %1000 = vmatpush1.bf16.msra.mxu0 0
    %1001 = vmatprep.subr.bf16.mxu0 0
    %1002 = vmatpush1.bf16.msra.mxu0 0
    %1003 = vmatprep.mubr.bf16.mxu0 0
    %1004 = vmatmul.mubr.bf16.gmra.mrb[0].mxu0 %v961
    %v1005 = vpop.f32.mrb[0].mxu0
    %v1006 = vadd.f32 0.0, %v1005
    %v1007 = vpop.f32.mrb[0].mxu0
    %v1008 = vadd.f32 0.0, %v1007
    %v1009 = vpop.f32.mrb[0].mxu0
    %v1010 = vpop.f32.mrb[0].mxu0
    %1011 = vdwg.mxu0
    %1012 = vmatprep.subr.bf16.mxu0 %v191
    %1013 = vmatpush1.bf16.msra.mxu0 %v190
    %1014 = vmatprep.subr.bf16.mxu0 %v195
    %1015 = vmatpush1.bf16.msra.mxu0 %v194
    %1016 = vmatprep.subr.bf16.mxu0 %v199
    %1017 = vmatpush1.bf16.msra.mxu0 %v198
    %1018 = vmatprep.subr.bf16.mxu0 %v203
    %1019 = vmatpush1.bf16.msra.mxu0 %v202
    %1020 = vmatprep.subr.bf16.mxu0 %v207
    %1021 = vmatpush1.bf16.msra.mxu0 %v206
    %1022 = vmatprep.subr.bf16.mxu0 %v211
    %1023 = vmatpush1.bf16.msra.mxu0 %v210
    %1024 = vmatprep.subr.bf16.mxu0 %v215
    %1025 = vmatpush1.bf16.msra.mxu0 %v214
    %1026 = vmatprep.subr.bf16.mxu0 %v219
    %1027 = vmatpush1.bf16.msra.mxu0 %v218
    %1028 = vmatprep.subr.bf16.mxu0 0
    %1029 = vmatpush1.bf16.msra.mxu0 0
    %1030 = vmatprep.subr.bf16.mxu0 0
    %1031 = vmatpush1.bf16.msra.mxu0 0
    %1032 = vmatprep.subr.bf16.mxu0 0
    %1033 = vmatpush1.bf16.msra.mxu0 0
    %1034 = vmatprep.subr.bf16.mxu0 0
    %1035 = vmatpush1.bf16.msra.mxu0 0
    %1036 = vmatprep.subr.bf16.mxu0 0
    %1037 = vmatpush1.bf16.msra.mxu0 0
    %1038 = vmatprep.subr.bf16.mxu0 0
    %1039 = vmatpush1.bf16.msra.mxu0 0
    %1040 = vmatprep.subr.bf16.mxu0 0
    %1041 = vmatpush1.bf16.msra.mxu0 0
    %1042 = vmatprep.subr.bf16.mxu0 0
    %1043 = vmatpush1.bf16.msra.mxu0 0
    %1044 = vmatprep.mubr.bf16.mxu0 0
    %1045 = vmatmul.mubr.bf16.gmra.mrb[0].mxu0 %v961
    %v1046 = vpop.f32.mrb[0].mxu0
    %v1047 = vadd.f32 0.0, %v1046
    %v1048 = vpop.f32.mrb[0].mxu0
    %v1049 = vadd.f32 0.0, %v1048
    %v1050 = vpop.f32.mrb[0].mxu0
    %v1051 = vpop.f32.mrb[0].mxu0
    %1052 = vdwg.mxu0
    %v1053 = vadd.f32 %v967, %v1006
    %v1054 = vadd.f32 %v968, %v1008
    %v1055 = vadd.f32 %v969, %v1047
    %v1056 = vadd.f32 %v970, %v1049
    %v1057 = vxor.u32 %v1053, 2147483648
    %v1058 = vmul.f32 %v1057, 1.442695
    %v1059 = vpow.pop %v1058
    %v1060 = vadd.f32 %v1059, 1.0
    %v1061 = vrcp.pop %v1060
    %v1062 = vmul.f32 1.0, %v1061
    %v1063 = vxor.u32 %v1054, 2147483648
    %v1064 = vmul.f32 %v1063, 1.442695
    %v1065 = vpow.pop %v1064
    %v1066 = vadd.f32 %v1065, 1.0
    %v1067 = vrcp.pop %v1066
    %v1068 = vmul.f32 1.0, %v1067
    %v1069 = vtanh.pop %v1055
    %v1070 = vxor.u32 %v1056, 2147483648
    %v1071 = vmul.f32 %v1070, 1.442695
    %v1072 = vpow.pop %v1071
    %v1073 = vadd.f32 %v1072, 1.0
    %v1074 = vrcp.pop %v1073
    %v1075 = vmul.f32 1.0, %v1074
    %v1076 = vmul.f32 %v1068, %v958
    %v1077 = vmul.f32 %v1062, %v1069
    %v1078 = vadd.f32 %v1076, %v1077
    %v1079 = vtanh.pop %v1078
    %v1080 = vmul.f32 %v1075, %v1079
    %v1081 = vpack.c.bf16 %v1080, %v1080
    %s1082 = scalar_lea.vmem [#allocation7], 24
    %1083 = vst [vmem:[%s1082] sm:$0xf] %v1081
    %s1084 = scalar_lea.vmem [#allocation2], 112
    %v1085 = vld [vmem:[%s1084] sm:$0xff]
    %v1086 = vld [vmem:[%s1084 + $0x8] sm:$0xff]
    %v1087 = vunpack.c.l.bf16 %v1085
    %v1088 = vunpack.c.h.bf16 %v1085
    %v1089 = vunpack.c.l.bf16 %v1086
    %v1090 = vunpack.c.h.bf16 %v1086
    %1091 = vmatprep.subr.bf16.mxu0 %v189
    %1092 = vmatpush1.bf16.msra.mxu0 %v188
    %1093 = vmatprep.subr.bf16.mxu0 %v193
    %1094 = vmatpush1.bf16.msra.mxu0 %v192
    %1095 = vmatprep.subr.bf16.mxu0 %v197
    %1096 = vmatpush1.bf16.msra.mxu0 %v196
    %1097 = vmatprep.subr.bf16.mxu0 %v201
    %1098 = vmatpush1.bf16.msra.mxu0 %v200
    %1099 = vmatprep.subr.bf16.mxu0 %v205
    %1100 = vmatpush1.bf16.msra.mxu0 %v204
    %1101 = vmatprep.subr.bf16.mxu0 %v209
    %1102 = vmatpush1.bf16.msra.mxu0 %v208
    %1103 = vmatprep.subr.bf16.mxu0 %v213
    %1104 = vmatpush1.bf16.msra.mxu0 %v212
    %1105 = vmatprep.subr.bf16.mxu0 %v217
    %1106 = vmatpush1.bf16.msra.mxu0 %v216
    %1107 = vmatprep.subr.bf16.mxu0 0
    %1108 = vmatpush1.bf16.msra.mxu0 0
    %1109 = vmatprep.subr.bf16.mxu0 0
    %1110 = vmatpush1.bf16.msra.mxu0 0
    %1111 = vmatprep.subr.bf16.mxu0 0
    %1112 = vmatpush1.bf16.msra.mxu0 0
    %1113 = vmatprep.subr.bf16.mxu0 0
    %1114 = vmatpush1.bf16.msra.mxu0 0
    %1115 = vmatprep.subr.bf16.mxu0 0
    %1116 = vmatpush1.bf16.msra.mxu0 0
    %1117 = vmatprep.subr.bf16.mxu0 0
    %1118 = vmatpush1.bf16.msra.mxu0 0
    %1119 = vmatprep.subr.bf16.mxu0 0
    %1120 = vmatpush1.bf16.msra.mxu0 0
    %1121 = vmatprep.subr.bf16.mxu0 0
    %1122 = vmatpush1.bf16.msra.mxu0 0
    %1123 = vmatprep.mubr.bf16.mxu0 0
    %1124 = vmatmul.mubr.bf16.gmra.mrb[0].mxu0 %v1081
    %v1125 = vpop.f32.mrb[0].mxu0
    %v1126 = vadd.f32 0.0, %v1125
    %v1127 = vpop.f32.mrb[0].mxu0
    %v1128 = vadd.f32 0.0, %v1127
    %v1129 = vpop.f32.mrb[0].mxu0
    %v1130 = vpop.f32.mrb[0].mxu0
    %1131 = vdwg.mxu0
    %1132 = vmatprep.subr.bf16.mxu0 %v191
    %1133 = vmatpush1.bf16.msra.mxu0 %v190
    %1134 = vmatprep.subr.bf16.mxu0 %v195
    %1135 = vmatpush1.bf16.msra.mxu0 %v194
    %1136 = vmatprep.subr.bf16.mxu0 %v199
    %1137 = vmatpush1.bf16.msra.mxu0 %v198
    %1138 = vmatprep.subr.bf16.mxu0 %v203
    %1139 = vmatpush1.bf16.msra.mxu0 %v202
    %1140 = vmatprep.subr.bf16.mxu0 %v207
    %1141 = vmatpush1.bf16.msra.mxu0 %v206
    %1142 = vmatprep.subr.bf16.mxu0 %v211
    %1143 = vmatpush1.bf16.msra.mxu0 %v210
    %1144 = vmatprep.subr.bf16.mxu0 %v215
    %1145 = vmatpush1.bf16.msra.mxu0 %v214
    %1146 = vmatprep.subr.bf16.mxu0 %v219
    %1147 = vmatpush1.bf16.msra.mxu0 %v218
    %1148 = vmatprep.subr.bf16.mxu0 0
    %1149 = vmatpush1.bf16.msra.mxu0 0
    %1150 = vmatprep.subr.bf16.mxu0 0
    %1151 = vmatpush1.bf16.msra.mxu0 0
    %1152 = vmatprep.subr.bf16.mxu0 0
    %1153 = vmatpush1.bf16.msra.mxu0 0
    %1154 = vmatprep.subr.bf16.mxu0 0
    %1155 = vmatpush1.bf16.msra.mxu0 0
    %1156 = vmatprep.subr.bf16.mxu0 0
    %1157 = vmatpush1.bf16.msra.mxu0 0
    %1158 = vmatprep.subr.bf16.mxu0 0
    %1159 = vmatpush1.bf16.msra.mxu0 0
    %1160 = vmatprep.subr.bf16.mxu0 0
    %1161 = vmatpush1.bf16.msra.mxu0 0
    %1162 = vmatprep.subr.bf16.mxu0 0
    %1163 = vmatpush1.bf16.msra.mxu0 0
    %1164 = vmatprep.mubr.bf16.mxu0 0
    %1165 = vmatmul.mubr.bf16.gmra.mrb[0].mxu0 %v1081
    %v1166 = vpop.f32.mrb[0].mxu0
    %v1167 = vadd.f32 0.0, %v1166
    %v1168 = vpop.f32.mrb[0].mxu0
    %v1169 = vadd.f32 0.0, %v1168
    %v1170 = vpop.f32.mrb[0].mxu0
    %v1171 = vpop.f32.mrb[0].mxu0
    %1172 = vdwg.mxu0
    %v1173 = vadd.f32 %v1087, %v1126
    %v1174 = vadd.f32 %v1088, %v1128
    %v1175 = vadd.f32 %v1089, %v1167
    %v1176 = vadd.f32 %v1090, %v1169
    %v1177 = vxor.u32 %v1173, 2147483648
    %v1178 = vmul.f32 %v1177, 1.442695
    %v1179 = vpow.pop %v1178
    %v1180 = vadd.f32 %v1179, 1.0
    %v1181 = vrcp.pop %v1180
    %v1182 = vmul.f32 1.0, %v1181
    %v1183 = vxor.u32 %v1174, 2147483648
    %v1184 = vmul.f32 %v1183, 1.442695
    %v1185 = vpow.pop %v1184
    %v1186 = vadd.f32 %v1185, 1.0
    %v1187 = vrcp.pop %v1186
    %v1188 = vmul.f32 1.0, %v1187
    %v1189 = vtanh.pop %v1175
    %v1190 = vxor.u32 %v1176, 2147483648
    %v1191 = vmul.f32 %v1190, 1.442695
    %v1192 = vpow.pop %v1191
    %v1193 = vadd.f32 %v1192, 1.0
    %v1194 = vrcp.pop %v1193
    %v1195 = vmul.f32 1.0, %v1194
    %v1196 = vmul.f32 %v1188, %v1078
    %v1197 = vmul.f32 %v1182, %v1189
    %v1198 = vadd.f32 %v1196, %v1197
    %v1199 = vtanh.pop %v1198
    %v1200 = vmul.f32 %v1195, %v1199
    %v1201 = vpack.c.bf16 %v1200, %v1200
    %s1202 = scalar_lea.vmem [#allocation7], 28
    %1203 = vst [vmem:[%s1202] sm:$0xf] %v1201
    %v1204 = vunpack.c.l.bf16 %v1201
    %1205 = vst [vmem:[#allocation8] sm:$0xff] %v1204
    %1206 = vst [vmem:[#allocation10] sm:$0xff] %v1198
    // Predicated region
    $region22: #{tpu_custom_call.1} parent=1 // pred_check
      _
    $region23: #{tpu_custom_call.1} parent=1 // pred_check_branch
      %1208 = sbr.rel (0) target = $region25
    $region24: #{tpu_custom_call.1} parent=1 // pred_region
      %s1210 = ssub.s32 512, 512
      %1211 = vsyncadd [#allocation4], %s1210
      %s1212 = sshll.u32 [#allocation7], 4
      %s1213 = int_to_ptr.vmem [resolvable:$true] %s1212
      %1218 = dma.vmem_to_hbm [thread:$0]  %s1213, 512, %s2, [#allocation4], 64, 64, 4
    $region25: #{tpu_custom_call.1} parent=1 // pred_fallthru
      _
    // Predicated region
    $region26: #{tpu_custom_call.1} parent=1 // pred_check
      _
    $region27: #{tpu_custom_call.1} parent=1 // pred_check_branch
      %1220 = sbr.rel (0) target = $region29
    $region28: #{tpu_custom_call.1} parent=1 // pred_region
      %s1222 = ssub.s32 128, 128
      %1223 = vsyncadd [#allocation9], %s1222
      %s1225 = sshll.u32 [#allocation8], 4
      %s1226 = int_to_ptr.vmem [resolvable:$true] %s1225
      %1228 = dma.vmem_to_hbm [thread:$0]  %s1226, 128, %s3, [#allocation9]
    $region29: #{tpu_custom_call.1} parent=1 // pred_fallthru
      _
    // Predicated region
    $region30: #{tpu_custom_call.1} parent=1 // pred_check
      _
    $region31: #{tpu_custom_call.1} parent=1 // pred_check_branch
      %1230 = sbr.rel (0) target = $region33
    $region32: #{tpu_custom_call.1} parent=1 // pred_region
      %s1232 = ssub.s32 128, 128
      %1233 = vsyncadd [#allocation9], %s1232
      %s1235 = sshll.u32 [#allocation10], 4
      %s1236 = int_to_ptr.vmem [resolvable:$true] %s1235
      %1238 = dma.vmem_to_hbm [thread:$0]  %s1236, 128, %s4, [#allocation9]
    $region33: #{tpu_custom_call.1} parent=1 // pred_fallthru
      _
    // Predicated region
    $region34: #{tpu_custom_call.1} parent=1 // pred_check
      _
    $region35: #{tpu_custom_call.1} parent=1 // pred_check_branch
      %1240 = sbr.rel (0) target = $region37
    $region36: #{tpu_custom_call.1} parent=1 // pred_region
      %1241 = dma.done [#allocation4], 512
    $region37: #{tpu_custom_call.1} parent=1 // pred_fallthru
      _
    // Predicated region
    $region38: #{tpu_custom_call.1} parent=1 // pred_check
      _
    $region39: #{tpu_custom_call.1} parent=1 // pred_check_branch
      %1243 = sbr.rel (0) target = $region41
    $region40: #{tpu_custom_call.1} parent=1 // pred_region
      %1244 = dma.done [#allocation9], 128
    $region41: #{tpu_custom_call.1} parent=1 // pred_fallthru
      _
    // Predicated region
    $region42: #{tpu_custom_call.1} parent=1 // pred_check
      _
    $region43: #{tpu_custom_call.1} parent=1 // pred_check_branch
      %1246 = sbr.rel (0) target = $region45
    $region44: #{tpu_custom_call.1} parent=1 // pred_region
      %1247 = dma.done [#allocation9], 128
    $region45: #{tpu_custom_call.1} parent=1 // pred_fallthru
      _
    %1248 = vsyncpa [#allocation3], 1
    %1249 = vsyncpa [#allocation6], 1
    %1250 = vsyncpa [#allocation4], 1
    %1251 = vsyncpa [#allocation9], 1

</llo_original>
